<compile_context>
chip_gen: v7x
topology: tpu7x:2x2x1
jax: 0.10.0
libtpu: 0.0.40
codegen_flags: <defaults>
</compile_context>

<pallas_src>
import functools

import jax
import jax.numpy as jnp
from jax.experimental import pallas as pl
from jax.experimental.pallas import tpu as pltpu


CFG = dict(vocab_size=128, hidden=32, n_layers=2, n_heads=2,
           intermediate=64, max_pos=16, type_vocab=2)
N_CLASSES = (3, 5)
LN_EPS = 1e-12


# ----------------------------- in-kernel helpers -----------------------------

def _mm(a_bf16, b_bf16):
    """MXU matmul: bf16 operands (caller hoists the casts), f32 accumulation."""
    return jnp.dot(a_bf16, b_bf16, preferred_element_type=jnp.float32)


def _mm_t(a_bf16, b_bf16):
    """a @ b.T without materializing the transpose (MXU handles trans_b)."""
    return jax.lax.dot_general(
        a_bf16, b_bf16,
        dimension_numbers=(((1,), (1,)), ((), ())),
        preferred_element_type=jnp.float32)


def _layer_norm(x, g, b, eps):
    mu = jnp.mean(x, axis=-1, keepdims=True)
    xc = x - mu
    var = jnp.mean(xc * xc, axis=-1, keepdims=True)
    return xc * jax.lax.rsqrt(var + eps) * g + b


def _erf(x):
    # Abramowitz & Stegun 7.1.26 polynomial (|error| < 1.5e-7): exact-erf GELU
    # semantics within f32 precision using only VPU/EUP-friendly primitives.
    a1, a2, a3, a4, a5 = 0.254829592, -0.284496736, 1.421413741, -1.453152027, 1.061405429
    p = 0.3275911
    ax = jnp.abs(x)
    t = 1.0 / (1.0 + p * ax)
    poly = ((((a5 * t + a4) * t + a3) * t + a2) * t + a1) * t
    y = 1.0 - poly * jnp.exp(-(ax * ax))
    return jnp.where(x < 0.0, -y, y)


def _gelu_exact(x):
    return 0.5 * x * (1.0 + _erf(x * 0.7071067811865476))


# ----------------------------- fused BERT kernel -----------------------------

def _bert_kernel(emb_ref, mask_ref, emb_g_ref, emb_b_ref,
                 wqkv_ref, bqkv_ref, wo_ref, bo_ref, ln1g_ref, ln1b_ref,
                 wi_ref, bi_ref, wo2_ref, bo2_ref, ln2g_ref, ln2b_ref,
                 pw_ref, pb_ref, hw_ref, hb_ref,
                 logits_ref,
                 ctx_ref, h_ref,
                 *, B, S, L, nH, dh, eps, scale):
    H = nH * dh

    # Embedding LayerNorm (no residual).
    h = _layer_norm(emb_ref[...], emb_g_ref[...], emb_b_ref[...], eps)   # [B*S, H] f32
    mask = mask_ref[...]                                                 # [B, S] additive

    # Toy config: all layer weights are VMEM resident; unroll the layer loop.
    for l in range(L):
        # ---- self-attention: fused QKV projection, head split in-kernel ----
        h_bf = h.astype(jnp.bfloat16)                       # hoisted cast (one per layer)
        qkv = _mm(h_bf, wqkv_ref[l]) + bqkv_ref[l]          # [B*S, 3H] f32
        qkv_bf = qkv.astype(jnp.bfloat16)                   # cast once, reused B*nH times

        for b in range(B):
            r0 = b * S
            m_b = mask[b:b + 1, :]                          # [1, S] additive key mask
            for hd in range(nH):
                c0 = hd * dh
                q = qkv_bf[r0:r0 + S, c0:c0 + dh]
                k = qkv_bf[r0:r0 + S, H + c0:H + c0 + dh]
                v = qkv_bf[r0:r0 + S, 2 * H + c0:2 * H + c0 + dh]
                s = _mm_t(q, k) * scale + m_b               # [S, S] f32
                s = s - jnp.max(s, axis=-1, keepdims=True)
                p = jnp.exp(s)
                p = p * pl.reciprocal(jnp.sum(p, axis=-1, keepdims=True), approx=True)
                ctx = _mm(p.astype(jnp.bfloat16), v)        # [S, dh] f32
                # Scatter the head context to its static (row, lane) offset —
                # vector stores, no lane-axis concatenation.
                ctx_ref[r0:r0 + S, c0:c0 + dh] = ctx

        # ONE full-K output projection over all rows / heads at once.
        attn_out = _mm(ctx_ref[...].astype(jnp.bfloat16), wo_ref[l]) + bo_ref[l]
        h1 = _layer_norm(attn_out + h, ln1g_ref[l], ln1b_ref[l], eps)

        # ---- feed-forward (exact-erf GELU) ----
        ffn = _gelu_exact(_mm(h1.astype(jnp.bfloat16), wi_ref[l]) + bi_ref[l])
        ffn = _mm(ffn.astype(jnp.bfloat16), wo2_ref[l]) + bo2_ref[l]
        h = _layer_norm(ffn + h1, ln2g_ref[l], ln2b_ref[l], eps)

    # ---- pooler (tanh on [CLS]) + fused fc1|fc2 heads ----
    # Strided sublane read of the per-sequence [CLS] rows (rows 0, S, 2S, ...);
    # replaces the previous one-hot selection matmul.
    h_ref[...] = h
    cls = h_ref[pl.ds(0, B, stride=S), :]                   # [B, H] f32
    pooled = jnp.tanh(_mm(cls.astype(jnp.bfloat16), pw_ref[...]) + pb_ref[...])
    logits_ref[...] = _mm(pooled.astype(jnp.bfloat16), hw_ref[...]) + hb_ref[...]


# -------------------------- parameters / forward glue ------------------------

def init_params(key, cfg, n_classes):
    H, I, L = cfg["hidden"], cfg["intermediate"], cfg["n_layers"]
    bf = jnp.bfloat16

    def nrm(k, shape, dtype=jnp.float32):
        return (0.02 * jax.random.normal(k, shape, jnp.float32)).astype(dtype)

    keys = iter(jax.random.split(key, 16))
    return {
        "word_emb": nrm(next(keys), (cfg["vocab_size"], H)),
        "pos_emb": nrm(next(keys), (cfg["max_pos"], H)),
        "type_emb": nrm(next(keys), (cfg["type_vocab"], H)),
        "emb_ln_g": jnp.ones((1, H), jnp.float32),
        "emb_ln_b": jnp.zeros((1, H), jnp.float32),
        # Per-layer weights stacked on a leading layer axis; matmul weights bf16.
        "wqkv": nrm(next(keys), (L, H, 3 * H), bf),
        "bqkv": jnp.zeros((L, 1, 3 * H), jnp.float32),
        "wo": nrm(next(keys), (L, H, H), bf),
        "bo": jnp.zeros((L, 1, H), jnp.float32),
        "ln1_g": jnp.ones((L, 1, H), jnp.float32),
        "ln1_b": jnp.zeros((L, 1, H), jnp.float32),
        "wi": nrm(next(keys), (L, H, I), bf),
        "bi": jnp.zeros((L, 1, I), jnp.float32),
        "wo2": nrm(next(keys), (L, I, H), bf),
        "bo2": jnp.zeros((L, 1, H), jnp.float32),
        "ln2_g": jnp.ones((L, 1, H), jnp.float32),
        "ln2_b": jnp.zeros((L, 1, H), jnp.float32),
        "pooler_w": nrm(next(keys), (H, H), bf),
        "pooler_b": jnp.zeros((1, H), jnp.float32),
        # fc1 and fc2 concatenated along the output axis.
        "head_w": nrm(next(keys), (H, sum(n_classes)), bf),
        "head_b": jnp.zeros((1, sum(n_classes)), jnp.float32),
    }


def _forward(params, input_ids, attention_mask):
    cfg = CFG
    B, S = input_ids.shape
    H, nH, L = cfg["hidden"], cfg["n_heads"], cfg["n_layers"]
    dh = H // nH
    n_out = sum(N_CLASSES)

    # TODO(synk): embedding-table gather stays in XLA (jnp.take); LayerNorm of
    # the summed embeddings happens inside the kernel.
    we = jnp.take(params["word_emb"], input_ids, axis=0)              # [B, S, H]
    pe = params["pos_emb"][:S][None, :, :]
    te = params["type_emb"][0][None, None, :]                         # token_type_ids == 0
    emb = (we + pe + te).reshape(B * S, H)

    # HF-style additive attention mask over keys.
    add_mask = (1.0 - attention_mask.astype(jnp.float32)) * -10000.0  # [B, S]

    kernel = functools.partial(
        _bert_kernel, B=B, S=S, L=L, nH=nH, dh=dh, eps=LN_EPS,
        scale=1.0 / float(dh) ** 0.5)

    # Grid-less call: every operand is a whole array resident in VMEM
    # (everything here is < 100 KiB); no per-grid-step overhead.
    logits = pl.pallas_call(
        kernel,
        out_shape=jax.ShapeDtypeStruct((B, n_out), jnp.float32),
        scratch_shapes=[
            pltpu.VMEM((B * S, H), jnp.float32),   # per-layer head-context scratch
            pltpu.VMEM((B * S, H), jnp.float32),   # final hidden state ([CLS] strided read)
        ],
    )(emb, add_mask,
      params["emb_ln_g"], params["emb_ln_b"],
      params["wqkv"], params["bqkv"], params["wo"], params["bo"],
      params["ln1_g"], params["ln1_b"],
      params["wi"], params["bi"], params["wo2"], params["bo2"],
      params["ln2_g"], params["ln2_b"],
      params["pooler_w"], params["pooler_b"],
      params["head_w"], params["head_b"])

    return logits[:, :N_CLASSES[0]], logits[:, N_CLASSES[0]:]


bert_classifier_forward = jax.jit(_forward)


# ----------------------------------- main -----------------------------------

if __name__ == "__main__":
    key = jax.random.PRNGKey(0)
    k_param, k_ids = jax.random.split(key)

    B, S = 2, 8
    params = init_params(k_param, CFG, N_CLASSES)

    input_ids = jax.random.randint(k_ids, (B, S), 0, CFG["vocab_size"], dtype=jnp.int32)
    attention_mask = jnp.array(
        [[1, 1, 1, 1, 1, 1, 1, 1],
         [1, 1, 1, 1, 1, 1, 0, 0]], dtype=jnp.int32)

    out1, out2 = bert_classifier_forward(params, input_ids, attention_mask)
    jax.block_until_ready((out1, out2))

    assert out1.shape == (B, N_CLASSES[0]) and out2.shape == (B, N_CLASSES[1])
    assert bool(jnp.all(jnp.isfinite(out1))) and bool(jnp.all(jnp.isfinite(out2)))
    print("KERNEL_OK")
</pallas_src>

<mosaic_0001>
module attributes {stable_mosaic.version = 11 : i64} {
  func.func @_bert_kernel(%arg0: memref<16x32xf32, #tpu.memory_space<vmem>>, %arg1: memref<2x8xf32, #tpu.memory_space<vmem>>, %arg2: memref<1x32xf32, #tpu.memory_space<vmem>>, %arg3: memref<1x32xf32, #tpu.memory_space<vmem>>, %arg4: memref<2x32x96xbf16, #tpu.memory_space<vmem>>, %arg5: memref<2x1x96xf32, #tpu.memory_space<vmem>>, %arg6: memref<2x32x32xbf16, #tpu.memory_space<vmem>>, %arg7: memref<2x1x32xf32, #tpu.memory_space<vmem>>, %arg8: memref<2x1x32xf32, #tpu.memory_space<vmem>>, %arg9: memref<2x1x32xf32, #tpu.memory_space<vmem>>, %arg10: memref<2x32x64xbf16, #tpu.memory_space<vmem>>, %arg11: memref<2x1x64xf32, #tpu.memory_space<vmem>>, %arg12: memref<2x64x32xbf16, #tpu.memory_space<vmem>>, %arg13: memref<2x1x32xf32, #tpu.memory_space<vmem>>, %arg14: memref<2x1x32xf32, #tpu.memory_space<vmem>>, %arg15: memref<2x1x32xf32, #tpu.memory_space<vmem>>, %arg16: memref<32x32xbf16, #tpu.memory_space<vmem>>, %arg17: memref<1x32xf32, #tpu.memory_space<vmem>>, %arg18: memref<32x8xbf16, #tpu.memory_space<vmem>>, %arg19: memref<1x8xf32, #tpu.memory_space<vmem>>, %arg20: memref<2x8xf32, #tpu.memory_space<vmem>>, %arg21: memref<16x32xf32, #tpu.memory_space<vmem>>, %arg22: memref<16x32xf32, #tpu.memory_space<vmem>>) attributes {dimension_semantics = [], scalar_prefetch = 0 : i64, scratch_operands = 2 : i64, tpu.core_type = #tpu.core_type<tc>} {
    %c0 = arith.constant 0 : index
    %c0_0 = arith.constant 0 : index
    %0 = vector.load %arg0[%c0, %c0_0] : memref<16x32xf32, #tpu.memory_space<vmem>>, vector<16x32xf32>
    %c0_1 = arith.constant 0 : index
    %c0_2 = arith.constant 0 : index
    %1 = vector.load %arg2[%c0_1, %c0_2] : memref<1x32xf32, #tpu.memory_space<vmem>>, vector<1x32xf32>
    %c0_3 = arith.constant 0 : index
    %c0_4 = arith.constant 0 : index
    %2 = vector.load %arg3[%c0_3, %c0_4] : memref<1x32xf32, #tpu.memory_space<vmem>>, vector<1x32xf32>
    %cst = arith.constant dense<0.000000e+00> : vector<16xf32>
    %3 = vector.multi_reduction <add>, %0, %cst [1] : vector<16x32xf32> to vector<16xf32>
    %4 = vector.shape_cast %3 : vector<16xf32> to vector<16x1xf32>
    %cst_5 = arith.constant 3.200000e+01 : f32
    %5 = vector.broadcast %cst_5 : f32 to vector<16x1xf32>
    %6 = arith.divf %4, %5 : vector<16x1xf32>
    %7 = vector.broadcast %6 : vector<16x1xf32> to vector<16x32xf32>
    %8 = arith.subf %0, %7 : vector<16x32xf32>
    %9 = arith.mulf %8, %8 : vector<16x32xf32>
    %cst_6 = arith.constant dense<0.000000e+00> : vector<16xf32>
    %10 = vector.multi_reduction <add>, %9, %cst_6 [1] : vector<16x32xf32> to vector<16xf32>
    %11 = vector.shape_cast %10 : vector<16xf32> to vector<16x1xf32>
    %cst_7 = arith.constant 3.200000e+01 : f32
    %12 = vector.broadcast %cst_7 : f32 to vector<16x1xf32>
    %13 = arith.divf %11, %12 : vector<16x1xf32>
    %cst_8 = arith.constant 9.99999996E-13 : f32
    %14 = vector.broadcast %cst_8 : f32 to vector<16x1xf32>
    %15 = arith.addf %13, %14 : vector<16x1xf32>
    %16 = math.rsqrt %15 : vector<16x1xf32>
    %17 = vector.broadcast %16 : vector<16x1xf32> to vector<16x32xf32>
    %18 = arith.mulf %8, %17 : vector<16x32xf32>
    %19 = vector.broadcast %1 : vector<1x32xf32> to vector<16x32xf32>
    %20 = arith.mulf %18, %19 : vector<16x32xf32>
    %21 = vector.broadcast %2 : vector<1x32xf32> to vector<16x32xf32>
    %22 = arith.addf %20, %21 : vector<16x32xf32>
    %c0_9 = arith.constant 0 : index
    %c0_10 = arith.constant 0 : index
    %23 = vector.load %arg1[%c0_9, %c0_10] : memref<2x8xf32, #tpu.memory_space<vmem>>, vector<2x8xf32>
    %24 = arith.truncf %22 : vector<16x32xf32> to vector<16x32xbf16>
    %c0_11 = arith.constant 0 : index
    %c0_12 = arith.constant 0 : index
    %c0_13 = arith.constant 0 : index
    %25 = vector.load %arg4[%c0_11, %c0_12, %c0_13] : memref<2x32x96xbf16, #tpu.memory_space<vmem>>, vector<1x32x96xbf16>
    %26 = vector.shape_cast %25 : vector<1x32x96xbf16> to vector<32x96xbf16>
    %cst_14 = arith.constant dense<0.000000e+00> : vector<16x96xf32>
    %27 = tpu.matmul %24, %26, %cst_14 {dimension_numbers = #tpu.dot_dimension_numbers<[1], [0], [0], [1], [0, 0, 1, 1], [], []>} : vector<16x32xbf16>, vector<32x96xbf16>, vector<16x96xf32> -> vector<16x96xf32>
    %c0_15 = arith.constant 0 : index
    %c0_16 = arith.constant 0 : index
    %c0_17 = arith.constant 0 : index
    %28 = vector.load %arg5[%c0_15, %c0_16, %c0_17] : memref<2x1x96xf32, #tpu.memory_space<vmem>>, vector<1x1x96xf32>
    %29 = vector.shape_cast %28 : vector<1x1x96xf32> to vector<1x96xf32>
    %30 = vector.broadcast %29 : vector<1x96xf32> to vector<16x96xf32>
    %31 = arith.addf %27, %30 : vector<16x96xf32>
    %32 = arith.truncf %31 : vector<16x96xf32> to vector<16x96xbf16>
    %33 = vector.extract_strided_slice %23 {offsets = [0, 0], sizes = [1, 8], strides = [1, 1]} : vector<2x8xf32> to vector<1x8xf32>
    %34 = vector.extract_strided_slice %32 {offsets = [0, 0], sizes = [8, 16], strides = [1, 1]} : vector<16x96xbf16> to vector<8x16xbf16>
    %35 = vector.extract_strided_slice %32 {offsets = [0, 32], sizes = [8, 16], strides = [1, 1]} : vector<16x96xbf16> to vector<8x16xbf16>
    %36 = vector.extract_strided_slice %32 {offsets = [0, 64], sizes = [8, 16], strides = [1, 1]} : vector<16x96xbf16> to vector<8x16xbf16>
    %cst_18 = arith.constant dense<0.000000e+00> : vector<8x8xf32>
    %37 = tpu.matmul %34, %35, %cst_18 {dimension_numbers = #tpu.dot_dimension_numbers<[1], [1], [0], [0], [0, 0, 1, 0], [], []>} : vector<8x16xbf16>, vector<8x16xbf16>, vector<8x8xf32> -> vector<8x8xf32>
    %cst_19 = arith.constant 2.500000e-01 : f32
    %38 = vector.broadcast %cst_19 : f32 to vector<8x8xf32>
    %39 = arith.mulf %37, %38 : vector<8x8xf32>
    %40 = vector.broadcast %33 : vector<1x8xf32> to vector<8x8xf32>
    %41 = arith.addf %39, %40 : vector<8x8xf32>
    %cst_20 = arith.constant dense<0xFF800000> : vector<8xf32>
    %42 = vector.multi_reduction <maximumf>, %41, %cst_20 [1] : vector<8x8xf32> to vector<8xf32>
    %43 = vector.shape_cast %42 : vector<8xf32> to vector<8x1xf32>
    %44 = vector.broadcast %43 : vector<8x1xf32> to vector<8x8xf32>
    %45 = arith.subf %41, %44 : vector<8x8xf32>
    %46 = math.exp %45 : vector<8x8xf32>
    %cst_21 = arith.constant dense<0.000000e+00> : vector<8xf32>
    %47 = vector.multi_reduction <add>, %46, %cst_21 [1] : vector<8x8xf32> to vector<8xf32>
    %48 = vector.shape_cast %47 : vector<8xf32> to vector<8x1xf32>
    %49 = tpu.reciprocal %48 {approx = true} : vector<8x1xf32> -> vector<8x1xf32>
    %50 = vector.broadcast %49 : vector<8x1xf32> to vector<8x8xf32>
    %51 = arith.mulf %46, %50 : vector<8x8xf32>
    %52 = arith.truncf %51 : vector<8x8xf32> to vector<8x8xbf16>
    %cst_22 = arith.constant dense<0.000000e+00> : vector<8x16xf32>
    %53 = tpu.matmul %52, %36, %cst_22 {dimension_numbers = #tpu.dot_dimension_numbers<[1], [0], [0], [1], [0, 0, 1, 1], [], []>} : vector<8x8xbf16>, vector<8x16xbf16>, vector<8x16xf32> -> vector<8x16xf32>
    %c0_23 = arith.constant 0 : index
    %c0_24 = arith.constant 0 : index
    %54 = vector.load %arg21[%c0_23, %c0_24] : memref<16x32xf32, #tpu.memory_space<vmem>>, vector<8x16xf32>
    tpu.vector_store %arg21[%c0_23, %c0_24], %53 {strides = array<i32>} : memref<16x32xf32, #tpu.memory_space<vmem>>, vector<8x16xf32>,
    %55 = vector.extract_strided_slice %32 {offsets = [0, 16], sizes = [8, 16], strides = [1, 1]} : vector<16x96xbf16> to vector<8x16xbf16>
    %56 = vector.extract_strided_slice %32 {offsets = [0, 48], sizes = [8, 16], strides = [1, 1]} : vector<16x96xbf16> to vector<8x16xbf16>
    %57 = vector.extract_strided_slice %32 {offsets = [0, 80], sizes = [8, 16], strides = [1, 1]} : vector<16x96xbf16> to vector<8x16xbf16>
    %cst_25 = arith.constant dense<0.000000e+00> : vector<8x8xf32>
    %58 = tpu.matmul %55, %56, %cst_25 {dimension_numbers = #tpu.dot_dimension_numbers<[1], [1], [0], [0], [0, 0, 1, 0], [], []>} : vector<8x16xbf16>, vector<8x16xbf16>, vector<8x8xf32> -> vector<8x8xf32>
    %cst_26 = arith.constant 2.500000e-01 : f32
    %59 = vector.broadcast %cst_26 : f32 to vector<8x8xf32>
    %60 = arith.mulf %58, %59 : vector<8x8xf32>
    %61 = vector.broadcast %33 : vector<1x8xf32> to vector<8x8xf32>
    %62 = arith.addf %60, %61 : vector<8x8xf32>
    %cst_27 = arith.constant dense<0xFF800000> : vector<8xf32>
    %63 = vector.multi_reduction <maximumf>, %62, %cst_27 [1] : vector<8x8xf32> to vector<8xf32>
    %64 = vector.shape_cast %63 : vector<8xf32> to vector<8x1xf32>
    %65 = vector.broadcast %64 : vector<8x1xf32> to vector<8x8xf32>
    %66 = arith.subf %62, %65 : vector<8x8xf32>
    %67 = math.exp %66 : vector<8x8xf32>
    %cst_28 = arith.constant dense<0.000000e+00> : vector<8xf32>
    %68 = vector.multi_reduction <add>, %67, %cst_28 [1] : vector<8x8xf32> to vector<8xf32>
    %69 = vector.shape_cast %68 : vector<8xf32> to vector<8x1xf32>
    %70 = tpu.reciprocal %69 {approx = true} : vector<8x1xf32> -> vector<8x1xf32>
    %71 = vector.broadcast %70 : vector<8x1xf32> to vector<8x8xf32>
    %72 = arith.mulf %67, %71 : vector<8x8xf32>
    %73 = arith.truncf %72 : vector<8x8xf32> to vector<8x8xbf16>
    %cst_29 = arith.constant dense<0.000000e+00> : vector<8x16xf32>
    %74 = tpu.matmul %73, %57, %cst_29 {dimension_numbers = #tpu.dot_dimension_numbers<[1], [0], [0], [1], [0, 0, 1, 1], [], []>} : vector<8x8xbf16>, vector<8x16xbf16>, vector<8x16xf32> -> vector<8x16xf32>
    %c0_30 = arith.constant 0 : index
    %c16 = arith.constant 16 : index
    %75 = vector.load %arg21[%c0_30, %c16] : memref<16x32xf32, #tpu.memory_space<vmem>>, vector<8x16xf32>
    tpu.vector_store %arg21[%c0_30, %c16], %74 {strides = array<i32>} : memref<16x32xf32, #tpu.memory_space<vmem>>, vector<8x16xf32>,
    %76 = vector.extract_strided_slice %23 {offsets = [1, 0], sizes = [1, 8], strides = [1, 1]} : vector<2x8xf32> to vector<1x8xf32>
    %77 = vector.extract_strided_slice %32 {offsets = [8, 0], sizes = [8, 16], strides = [1, 1]} : vector<16x96xbf16> to vector<8x16xbf16>
    %78 = vector.extract_strided_slice %32 {offsets = [8, 32], sizes = [8, 16], strides = [1, 1]} : vector<16x96xbf16> to vector<8x16xbf16>
    %79 = vector.extract_strided_slice %32 {offsets = [8, 64], sizes = [8, 16], strides = [1, 1]} : vector<16x96xbf16> to vector<8x16xbf16>
    %cst_31 = arith.constant dense<0.000000e+00> : vector<8x8xf32>
    %80 = tpu.matmul %77, %78, %cst_31 {dimension_numbers = #tpu.dot_dimension_numbers<[1], [1], [0], [0], [0, 0, 1, 0], [], []>} : vector<8x16xbf16>, vector<8x16xbf16>, vector<8x8xf32> -> vector<8x8xf32>
    %cst_32 = arith.constant 2.500000e-01 : f32
    %81 = vector.broadcast %cst_32 : f32 to vector<8x8xf32>
    %82 = arith.mulf %80, %81 : vector<8x8xf32>
    %83 = vector.broadcast %76 : vector<1x8xf32> to vector<8x8xf32>
    %84 = arith.addf %82, %83 : vector<8x8xf32>
    %cst_33 = arith.constant dense<0xFF800000> : vector<8xf32>
    %85 = vector.multi_reduction <maximumf>, %84, %cst_33 [1] : vector<8x8xf32> to vector<8xf32>
    %86 = vector.shape_cast %85 : vector<8xf32> to vector<8x1xf32>
    %87 = vector.broadcast %86 : vector<8x1xf32> to vector<8x8xf32>
    %88 = arith.subf %84, %87 : vector<8x8xf32>
    %89 = math.exp %88 : vector<8x8xf32>
    %cst_34 = arith.constant dense<0.000000e+00> : vector<8xf32>
    %90 = vector.multi_reduction <add>, %89, %cst_34 [1] : vector<8x8xf32> to vector<8xf32>
    %91 = vector.shape_cast %90 : vector<8xf32> to vector<8x1xf32>
    %92 = tpu.reciprocal %91 {approx = true} : vector<8x1xf32> -> vector<8x1xf32>
    %93 = vector.broadcast %92 : vector<8x1xf32> to vector<8x8xf32>
    %94 = arith.mulf %89, %93 : vector<8x8xf32>
    %95 = arith.truncf %94 : vector<8x8xf32> to vector<8x8xbf16>
    %cst_35 = arith.constant dense<0.000000e+00> : vector<8x16xf32>
    %96 = tpu.matmul %95, %79, %cst_35 {dimension_numbers = #tpu.dot_dimension_numbers<[1], [0], [0], [1], [0, 0, 1, 1], [], []>} : vector<8x8xbf16>, vector<8x16xbf16>, vector<8x16xf32> -> vector<8x16xf32>
    %c8 = arith.constant 8 : index
    %c0_36 = arith.constant 0 : index
    %97 = vector.load %arg21[%c8, %c0_36] : memref<16x32xf32, #tpu.memory_space<vmem>>, vector<8x16xf32>
    tpu.vector_store %arg21[%c8, %c0_36], %96 {strides = array<i32>} : memref<16x32xf32, #tpu.memory_space<vmem>>, vector<8x16xf32>,
    %98 = vector.extract_strided_slice %32 {offsets = [8, 16], sizes = [8, 16], strides = [1, 1]} : vector<16x96xbf16> to vector<8x16xbf16>
    %99 = vector.extract_strided_slice %32 {offsets = [8, 48], sizes = [8, 16], strides = [1, 1]} : vector<16x96xbf16> to vector<8x16xbf16>
    %100 = vector.extract_strided_slice %32 {offsets = [8, 80], sizes = [8, 16], strides = [1, 1]} : vector<16x96xbf16> to vector<8x16xbf16>
    %cst_37 = arith.constant dense<0.000000e+00> : vector<8x8xf32>
    %101 = tpu.matmul %98, %99, %cst_37 {dimension_numbers = #tpu.dot_dimension_numbers<[1], [1], [0], [0], [0, 0, 1, 0], [], []>} : vector<8x16xbf16>, vector<8x16xbf16>, vector<8x8xf32> -> vector<8x8xf32>
    %cst_38 = arith.constant 2.500000e-01 : f32
    %102 = vector.broadcast %cst_38 : f32 to vector<8x8xf32>
    %103 = arith.mulf %101, %102 : vector<8x8xf32>
    %104 = vector.broadcast %76 : vector<1x8xf32> to vector<8x8xf32>
    %105 = arith.addf %103, %104 : vector<8x8xf32>
    %cst_39 = arith.constant dense<0xFF800000> : vector<8xf32>
    %106 = vector.multi_reduction <maximumf>, %105, %cst_39 [1] : vector<8x8xf32> to vector<8xf32>
    %107 = vector.shape_cast %106 : vector<8xf32> to vector<8x1xf32>
    %108 = vector.broadcast %107 : vector<8x1xf32> to vector<8x8xf32>
    %109 = arith.subf %105, %108 : vector<8x8xf32>
    %110 = math.exp %109 : vector<8x8xf32>
    %cst_40 = arith.constant dense<0.000000e+00> : vector<8xf32>
    %111 = vector.multi_reduction <add>, %110, %cst_40 [1] : vector<8x8xf32> to vector<8xf32>
    %112 = vector.shape_cast %111 : vector<8xf32> to vector<8x1xf32>
    %113 = tpu.reciprocal %112 {approx = true} : vector<8x1xf32> -> vector<8x1xf32>
    %114 = vector.broadcast %113 : vector<8x1xf32> to vector<8x8xf32>
    %115 = arith.mulf %110, %114 : vector<8x8xf32>
    %116 = arith.truncf %115 : vector<8x8xf32> to vector<8x8xbf16>
    %cst_41 = arith.constant dense<0.000000e+00> : vector<8x16xf32>
    %117 = tpu.matmul %116, %100, %cst_41 {dimension_numbers = #tpu.dot_dimension_numbers<[1], [0], [0], [1], [0, 0, 1, 1], [], []>} : vector<8x8xbf16>, vector<8x16xbf16>, vector<8x16xf32> -> vector<8x16xf32>
    %c8_42 = arith.constant 8 : index
    %c16_43 = arith.constant 16 : index
    %118 = vector.load %arg21[%c8_42, %c16_43] : memref<16x32xf32, #tpu.memory_space<vmem>>, vector<8x16xf32>
    tpu.vector_store %arg21[%c8_42, %c16_43], %117 {strides = array<i32>} : memref<16x32xf32, #tpu.memory_space<vmem>>, vector<8x16xf32>,
    %c0_44 = arith.constant 0 : index
    %c0_45 = arith.constant 0 : index
    %119 = vector.load %arg21[%c0_44, %c0_45] : memref<16x32xf32, #tpu.memory_space<vmem>>, vector<16x32xf32>
    %120 = arith.truncf %119 : vector<16x32xf32> to vector<16x32xbf16>
    %c0_46 = arith.constant 0 : index
    %c0_47 = arith.constant 0 : index
    %c0_48 = arith.constant 0 : index
    %121 = vector.load %arg6[%c0_46, %c0_47, %c0_48] : memref<2x32x32xbf16, #tpu.memory_space<vmem>>, vector<1x32x32xbf16>
    %122 = vector.shape_cast %121 : vector<1x32x32xbf16> to vector<32x32xbf16>
    %cst_49 = arith.constant dense<0.000000e+00> : vector<16x32xf32>
    %123 = tpu.matmul %120, %122, %cst_49 {dimension_numbers = #tpu.dot_dimension_numbers<[1], [0], [0], [1], [0, 0, 1, 1], [], []>} : vector<16x32xbf16>, vector<32x32xbf16>, vector<16x32xf32> -> vector<16x32xf32>
    %c0_50 = arith.constant 0 : index
    %c0_51 = arith.constant 0 : index
    %c0_52 = arith.constant 0 : index
    %124 = vector.load %arg7[%c0_50, %c0_51, %c0_52] : memref<2x1x32xf32, #tpu.memory_space<vmem>>, vector<1x1x32xf32>
    %125 = vector.shape_cast %124 : vector<1x1x32xf32> to vector<1x32xf32>
    %126 = vector.broadcast %125 : vector<1x32xf32> to vector<16x32xf32>
    %127 = arith.addf %123, %126 : vector<16x32xf32>
    %128 = arith.addf %127, %22 : vector<16x32xf32>
    %c0_53 = arith.constant 0 : index
    %c0_54 = arith.constant 0 : index
    %c0_55 = arith.constant 0 : index
    %129 = vector.load %arg8[%c0_53, %c0_54, %c0_55] : memref<2x1x32xf32, #tpu.memory_space<vmem>>, vector<1x1x32xf32>
    %130 = vector.shape_cast %129 : vector<1x1x32xf32> to vector<1x32xf32>
    %c0_56 = arith.constant 0 : index
    %c0_57 = arith.constant 0 : index
    %c0_58 = arith.constant 0 : index
    %131 = vector.load %arg9[%c0_56, %c0_57, %c0_58] : memref<2x1x32xf32, #tpu.memory_space<vmem>>, vector<1x1x32xf32>
    %132 = vector.shape_cast %131 : vector<1x1x32xf32> to vector<1x32xf32>
    %cst_59 = arith.constant dense<0.000000e+00> : vector<16xf32>
    %133 = vector.multi_reduction <add>, %128, %cst_59 [1] : vector<16x32xf32> to vector<16xf32>
    %134 = vector.shape_cast %133 : vector<16xf32> to vector<16x1xf32>
    %cst_60 = arith.constant 3.200000e+01 : f32
    %135 = vector.broadcast %cst_60 : f32 to vector<16x1xf32>
    %136 = arith.divf %134, %135 : vector<16x1xf32>
    %137 = vector.broadcast %136 : vector<16x1xf32> to vector<16x32xf32>
    %138 = arith.subf %128, %137 : vector<16x32xf32>
    %139 = arith.mulf %138, %138 : vector<16x32xf32>
    %cst_61 = arith.constant dense<0.000000e+00> : vector<16xf32>
    %140 = vector.multi_reduction <add>, %139, %cst_61 [1] : vector<16x32xf32> to vector<16xf32>
    %141 = vector.shape_cast %140 : vector<16xf32> to vector<16x1xf32>
    %cst_62 = arith.constant 3.200000e+01 : f32
    %142 = vector.broadcast %cst_62 : f32 to vector<16x1xf32>
    %143 = arith.divf %141, %142 : vector<16x1xf32>
    %cst_63 = arith.constant 9.99999996E-13 : f32
    %144 = vector.broadcast %cst_63 : f32 to vector<16x1xf32>
    %145 = arith.addf %143, %144 : vector<16x1xf32>
    %146 = math.rsqrt %145 : vector<16x1xf32>
    %147 = vector.broadcast %146 : vector<16x1xf32> to vector<16x32xf32>
    %148 = arith.mulf %138, %147 : vector<16x32xf32>
    %149 = vector.broadcast %130 : vector<1x32xf32> to vector<16x32xf32>
    %150 = arith.mulf %148, %149 : vector<16x32xf32>
    %151 = vector.broadcast %132 : vector<1x32xf32> to vector<16x32xf32>
    %152 = arith.addf %150, %151 : vector<16x32xf32>
    %153 = arith.truncf %152 : vector<16x32xf32> to vector<16x32xbf16>
    %c0_64 = arith.constant 0 : index
    %c0_65 = arith.constant 0 : index
    %c0_66 = arith.constant 0 : index
    %154 = vector.load %arg10[%c0_64, %c0_65, %c0_66] : memref<2x32x64xbf16, #tpu.memory_space<vmem>>, vector<1x32x64xbf16>
    %155 = vector.shape_cast %154 : vector<1x32x64xbf16> to vector<32x64xbf16>
    %cst_67 = arith.constant dense<0.000000e+00> : vector<16x64xf32>
    %156 = tpu.matmul %153, %155, %cst_67 {dimension_numbers = #tpu.dot_dimension_numbers<[1], [0], [0], [1], [0, 0, 1, 1], [], []>} : vector<16x32xbf16>, vector<32x64xbf16>, vector<16x64xf32> -> vector<16x64xf32>
    %c0_68 = arith.constant 0 : index
    %c0_69 = arith.constant 0 : index
    %c0_70 = arith.constant 0 : index
    %157 = vector.load %arg11[%c0_68, %c0_69, %c0_70] : memref<2x1x64xf32, #tpu.memory_space<vmem>>, vector<1x1x64xf32>
    %158 = vector.shape_cast %157 : vector<1x1x64xf32> to vector<1x64xf32>
    %159 = vector.broadcast %158 : vector<1x64xf32> to vector<16x64xf32>
    %160 = arith.addf %156, %159 : vector<16x64xf32>
    %cst_71 = arith.constant 5.000000e-01 : f32
    %161 = vector.broadcast %cst_71 : f32 to vector<16x64xf32>
    %162 = arith.mulf %161, %160 : vector<16x64xf32>
    %cst_72 = arith.constant 0.707106769 : f32
    %163 = vector.broadcast %cst_72 : f32 to vector<16x64xf32>
    %164 = arith.mulf %160, %163 : vector<16x64xf32>
    %165 = math.absf %164 : vector<16x64xf32>
    %cst_73 = arith.constant 0.327591091 : f32
    %166 = vector.broadcast %cst_73 : f32 to vector<16x64xf32>
    %167 = arith.mulf %166, %165 : vector<16x64xf32>
    %cst_74 = arith.constant 1.000000e+00 : f32
    %168 = vector.broadcast %cst_74 : f32 to vector<16x64xf32>
    %169 = arith.addf %168, %167 : vector<16x64xf32>
    %cst_75 = arith.constant 1.000000e+00 : f32
    %170 = vector.broadcast %cst_75 : f32 to vector<16x64xf32>
    %171 = arith.divf %170, %169 : vector<16x64xf32>
    %cst_76 = arith.constant 1.06140542 : f32
    %172 = vector.broadcast %cst_76 : f32 to vector<16x64xf32>
    %173 = arith.mulf %172, %171 : vector<16x64xf32>
    %cst_77 = arith.constant -1.45315206 : f32
    %174 = vector.broadcast %cst_77 : f32 to vector<16x64xf32>
    %175 = arith.addf %173, %174 : vector<16x64xf32>
    %176 = arith.mulf %175, %171 : vector<16x64xf32>
    %cst_78 = arith.constant 1.42141378 : f32
    %177 = vector.broadcast %cst_78 : f32 to vector<16x64xf32>
    %178 = arith.addf %176, %177 : vector<16x64xf32>
    %179 = arith.mulf %178, %171 : vector<16x64xf32>
    %cst_79 = arith.constant -0.284496725 : f32
    %180 = vector.broadcast %cst_79 : f32 to vector<16x64xf32>
    %181 = arith.addf %179, %180 : vector<16x64xf32>
    %182 = arith.mulf %181, %171 : vector<16x64xf32>
    %cst_80 = arith.constant 0.254829586 : f32
    %183 = vector.broadcast %cst_80 : f32 to vector<16x64xf32>
    %184 = arith.addf %182, %183 : vector<16x64xf32>
    %185 = arith.mulf %184, %171 : vector<16x64xf32>
    %186 = arith.mulf %165, %165 : vector<16x64xf32>
    %cst_81 = arith.constant 0.000000e+00 : f32
    %187 = vector.broadcast %cst_81 : f32 to vector<16x64xf32>
    %188 = arith.subf %187, %186 : vector<16x64xf32>
    %189 = math.exp %188 : vector<16x64xf32>
    %190 = arith.mulf %185, %189 : vector<16x64xf32>
    %cst_82 = arith.constant 1.000000e+00 : f32
    %191 = vector.broadcast %cst_82 : f32 to vector<16x64xf32>
    %192 = arith.subf %191, %190 : vector<16x64xf32>
    %cst_83 = arith.constant 0.000000e+00 : f32
    %193 = vector.broadcast %cst_83 : f32 to vector<16x64xf32>
    %194 = arith.cmpf olt, %164, %193 : vector<16x64xf32>
    %cst_84 = arith.constant 0.000000e+00 : f32
    %195 = vector.broadcast %cst_84 : f32 to vector<16x64xf32>
    %196 = arith.subf %195, %192 : vector<16x64xf32>
    %197 = arith.select %194, %196, %192 : vector<16x64xi1>, vector<16x64xf32>
    %cst_85 = arith.constant 1.000000e+00 : f32
    %198 = vector.broadcast %cst_85 : f32 to vector<16x64xf32>
    %199 = arith.addf %198, %197 : vector<16x64xf32>
    %200 = arith.mulf %162, %199 : vector<16x64xf32>
    %201 = arith.truncf %200 : vector<16x64xf32> to vector<16x64xbf16>
    %c0_86 = arith.constant 0 : index
    %c0_87 = arith.constant 0 : index
    %c0_88 = arith.constant 0 : index
    %202 = vector.load %arg12[%c0_86, %c0_87, %c0_88] : memref<2x64x32xbf16, #tpu.memory_space<vmem>>, vector<1x64x32xbf16>
    %203 = vector.shape_cast %202 : vector<1x64x32xbf16> to vector<64x32xbf16>
    %cst_89 = arith.constant dense<0.000000e+00> : vector<16x32xf32>
    %204 = tpu.matmul %201, %203, %cst_89 {dimension_numbers = #tpu.dot_dimension_numbers<[1], [0], [0], [1], [0, 0, 1, 1], [], []>} : vector<16x64xbf16>, vector<64x32xbf16>, vector<16x32xf32> -> vector<16x32xf32>
    %c0_90 = arith.constant 0 : index
    %c0_91 = arith.constant 0 : index
    %c0_92 = arith.constant 0 : index
    %205 = vector.load %arg13[%c0_90, %c0_91, %c0_92] : memref<2x1x32xf32, #tpu.memory_space<vmem>>, vector<1x1x32xf32>
    %206 = vector.shape_cast %205 : vector<1x1x32xf32> to vector<1x32xf32>
    %207 = vector.broadcast %206 : vector<1x32xf32> to vector<16x32xf32>
    %208 = arith.addf %204, %207 : vector<16x32xf32>
    %209 = arith.addf %208, %152 : vector<16x32xf32>
    %c0_93 = arith.constant 0 : index
    %c0_94 = arith.constant 0 : index
    %c0_95 = arith.constant 0 : index
    %210 = vector.load %arg14[%c0_93, %c0_94, %c0_95] : memref<2x1x32xf32, #tpu.memory_space<vmem>>, vector<1x1x32xf32>
    %211 = vector.shape_cast %210 : vector<1x1x32xf32> to vector<1x32xf32>
    %c0_96 = arith.constant 0 : index
    %c0_97 = arith.constant 0 : index
    %c0_98 = arith.constant 0 : index
    %212 = vector.load %arg15[%c0_96, %c0_97, %c0_98] : memref<2x1x32xf32, #tpu.memory_space<vmem>>, vector<1x1x32xf32>
    %213 = vector.shape_cast %212 : vector<1x1x32xf32> to vector<1x32xf32>
    %cst_99 = arith.constant dense<0.000000e+00> : vector<16xf32>
    %214 = vector.multi_reduction <add>, %209, %cst_99 [1] : vector<16x32xf32> to vector<16xf32>
    %215 = vector.shape_cast %214 : vector<16xf32> to vector<16x1xf32>
    %cst_100 = arith.constant 3.200000e+01 : f32
    %216 = vector.broadcast %cst_100 : f32 to vector<16x1xf32>
    %217 = arith.divf %215, %216 : vector<16x1xf32>
    %218 = vector.broadcast %217 : vector<16x1xf32> to vector<16x32xf32>
    %219 = arith.subf %209, %218 : vector<16x32xf32>
    %220 = arith.mulf %219, %219 : vector<16x32xf32>
    %cst_101 = arith.constant dense<0.000000e+00> : vector<16xf32>
    %221 = vector.multi_reduction <add>, %220, %cst_101 [1] : vector<16x32xf32> to vector<16xf32>
    %222 = vector.shape_cast %221 : vector<16xf32> to vector<16x1xf32>
    %cst_102 = arith.constant 3.200000e+01 : f32
    %223 = vector.broadcast %cst_102 : f32 to vector<16x1xf32>
    %224 = arith.divf %222, %223 : vector<16x1xf32>
    %cst_103 = arith.constant 9.99999996E-13 : f32
    %225 = vector.broadcast %cst_103 : f32 to vector<16x1xf32>
    %226 = arith.addf %224, %225 : vector<16x1xf32>
    %227 = math.rsqrt %226 : vector<16x1xf32>
    %228 = vector.broadcast %227 : vector<16x1xf32> to vector<16x32xf32>
    %229 = arith.mulf %219, %228 : vector<16x32xf32>
    %230 = vector.broadcast %211 : vector<1x32xf32> to vector<16x32xf32>
    %231 = arith.mulf %229, %230 : vector<16x32xf32>
    %232 = vector.broadcast %213 : vector<1x32xf32> to vector<16x32xf32>
    %233 = arith.addf %231, %232 : vector<16x32xf32>
    %234 = arith.truncf %233 : vector<16x32xf32> to vector<16x32xbf16>
    %c1 = arith.constant 1 : index
    %c0_104 = arith.constant 0 : index
    %c0_105 = arith.constant 0 : index
    %235 = vector.load %arg4[%c1, %c0_104, %c0_105] : memref<2x32x96xbf16, #tpu.memory_space<vmem>>, vector<1x32x96xbf16>
    %236 = vector.shape_cast %235 : vector<1x32x96xbf16> to vector<32x96xbf16>
    %cst_106 = arith.constant dense<0.000000e+00> : vector<16x96xf32>
    %237 = tpu.matmul %234, %236, %cst_106 {dimension_numbers = #tpu.dot_dimension_numbers<[1], [0], [0], [1], [0, 0, 1, 1], [], []>} : vector<16x32xbf16>, vector<32x96xbf16>, vector<16x96xf32> -> vector<16x96xf32>
    %c1_107 = arith.constant 1 : index
    %c0_108 = arith.constant 0 : index
    %c0_109 = arith.constant 0 : index
    %238 = vector.load %arg5[%c1_107, %c0_108, %c0_109] : memref<2x1x96xf32, #tpu.memory_space<vmem>>, vector<1x1x96xf32>
    %239 = vector.shape_cast %238 : vector<1x1x96xf32> to vector<1x96xf32>
    %240 = vector.broadcast %239 : vector<1x96xf32> to vector<16x96xf32>
    %241 = arith.addf %237, %240 : vector<16x96xf32>
    %242 = arith.truncf %241 : vector<16x96xf32> to vector<16x96xbf16>
    %243 = vector.extract_strided_slice %23 {offsets = [0, 0], sizes = [1, 8], strides = [1, 1]} : vector<2x8xf32> to vector<1x8xf32>
    %244 = vector.extract_strided_slice %242 {offsets = [0, 0], sizes = [8, 16], strides = [1, 1]} : vector<16x96xbf16> to vector<8x16xbf16>
    %245 = vector.extract_strided_slice %242 {offsets = [0, 32], sizes = [8, 16], strides = [1, 1]} : vector<16x96xbf16> to vector<8x16xbf16>
    %246 = vector.extract_strided_slice %242 {offsets = [0, 64], sizes = [8, 16], strides = [1, 1]} : vector<16x96xbf16> to vector<8x16xbf16>
    %cst_110 = arith.constant dense<0.000000e+00> : vector<8x8xf32>
    %247 = tpu.matmul %244, %245, %cst_110 {dimension_numbers = #tpu.dot_dimension_numbers<[1], [1], [0], [0], [0, 0, 1, 0], [], []>} : vector<8x16xbf16>, vector<8x16xbf16>, vector<8x8xf32> -> vector<8x8xf32>
    %cst_111 = arith.constant 2.500000e-01 : f32
    %248 = vector.broadcast %cst_111 : f32 to vector<8x8xf32>
    %249 = arith.mulf %247, %248 : vector<8x8xf32>
    %250 = vector.broadcast %243 : vector<1x8xf32> to vector<8x8xf32>
    %251 = arith.addf %249, %250 : vector<8x8xf32>
    %cst_112 = arith.constant dense<0xFF800000> : vector<8xf32>
    %252 = vector.multi_reduction <maximumf>, %251, %cst_112 [1] : vector<8x8xf32> to vector<8xf32>
    %253 = vector.shape_cast %252 : vector<8xf32> to vector<8x1xf32>
    %254 = vector.broadcast %253 : vector<8x1xf32> to vector<8x8xf32>
    %255 = arith.subf %251, %254 : vector<8x8xf32>
    %256 = math.exp %255 : vector<8x8xf32>
    %cst_113 = arith.constant dense<0.000000e+00> : vector<8xf32>
    %257 = vector.multi_reduction <add>, %256, %cst_113 [1] : vector<8x8xf32> to vector<8xf32>
    %258 = vector.shape_cast %257 : vector<8xf32> to vector<8x1xf32>
    %259 = tpu.reciprocal %258 {approx = true} : vector<8x1xf32> -> vector<8x1xf32>
    %260 = vector.broadcast %259 : vector<8x1xf32> to vector<8x8xf32>
    %261 = arith.mulf %256, %260 : vector<8x8xf32>
    %262 = arith.truncf %261 : vector<8x8xf32> to vector<8x8xbf16>
    %cst_114 = arith.constant dense<0.000000e+00> : vector<8x16xf32>
    %263 = tpu.matmul %262, %246, %cst_114 {dimension_numbers = #tpu.dot_dimension_numbers<[1], [0], [0], [1], [0, 0, 1, 1], [], []>} : vector<8x8xbf16>, vector<8x16xbf16>, vector<8x16xf32> -> vector<8x16xf32>
    %c0_115 = arith.constant 0 : index
    %c0_116 = arith.constant 0 : index
    %264 = vector.load %arg21[%c0_115, %c0_116] : memref<16x32xf32, #tpu.memory_space<vmem>>, vector<8x16xf32>
    tpu.vector_store %arg21[%c0_115, %c0_116], %263 {strides = array<i32>} : memref<16x32xf32, #tpu.memory_space<vmem>>, vector<8x16xf32>,
    %265 = vector.extract_strided_slice %242 {offsets = [0, 16], sizes = [8, 16], strides = [1, 1]} : vector<16x96xbf16> to vector<8x16xbf16>
    %266 = vector.extract_strided_slice %242 {offsets = [0, 48], sizes = [8, 16], strides = [1, 1]} : vector<16x96xbf16> to vector<8x16xbf16>
    %267 = vector.extract_strided_slice %242 {offsets = [0, 80], sizes = [8, 16], strides = [1, 1]} : vector<16x96xbf16> to vector<8x16xbf16>
    %cst_117 = arith.constant dense<0.000000e+00> : vector<8x8xf32>
    %268 = tpu.matmul %265, %266, %cst_117 {dimension_numbers = #tpu.dot_dimension_numbers<[1], [1], [0], [0], [0, 0, 1, 0], [], []>} : vector<8x16xbf16>, vector<8x16xbf16>, vector<8x8xf32> -> vector<8x8xf32>
    %cst_118 = arith.constant 2.500000e-01 : f32
    %269 = vector.broadcast %cst_118 : f32 to vector<8x8xf32>
    %270 = arith.mulf %268, %269 : vector<8x8xf32>
    %271 = vector.broadcast %243 : vector<1x8xf32> to vector<8x8xf32>
    %272 = arith.addf %270, %271 : vector<8x8xf32>
    %cst_119 = arith.constant dense<0xFF800000> : vector<8xf32>
    %273 = vector.multi_reduction <maximumf>, %272, %cst_119 [1] : vector<8x8xf32> to vector<8xf32>
    %274 = vector.shape_cast %273 : vector<8xf32> to vector<8x1xf32>
    %275 = vector.broadcast %274 : vector<8x1xf32> to vector<8x8xf32>
    %276 = arith.subf %272, %275 : vector<8x8xf32>
    %277 = math.exp %276 : vector<8x8xf32>
    %cst_120 = arith.constant dense<0.000000e+00> : vector<8xf32>
    %278 = vector.multi_reduction <add>, %277, %cst_120 [1] : vector<8x8xf32> to vector<8xf32>
    %279 = vector.shape_cast %278 : vector<8xf32> to vector<8x1xf32>
    %280 = tpu.reciprocal %279 {approx = true} : vector<8x1xf32> -> vector<8x1xf32>
    %281 = vector.broadcast %280 : vector<8x1xf32> to vector<8x8xf32>
    %282 = arith.mulf %277, %281 : vector<8x8xf32>
    %283 = arith.truncf %282 : vector<8x8xf32> to vector<8x8xbf16>
    %cst_121 = arith.constant dense<0.000000e+00> : vector<8x16xf32>
    %284 = tpu.matmul %283, %267, %cst_121 {dimension_numbers = #tpu.dot_dimension_numbers<[1], [0], [0], [1], [0, 0, 1, 1], [], []>} : vector<8x8xbf16>, vector<8x16xbf16>, vector<8x16xf32> -> vector<8x16xf32>
    %c0_122 = arith.constant 0 : index
    %c16_123 = arith.constant 16 : index
    %285 = vector.load %arg21[%c0_122, %c16_123] : memref<16x32xf32, #tpu.memory_space<vmem>>, vector<8x16xf32>
    tpu.vector_store %arg21[%c0_122, %c16_123], %284 {strides = array<i32>} : memref<16x32xf32, #tpu.memory_space<vmem>>, vector<8x16xf32>,
    %286 = vector.extract_strided_slice %23 {offsets = [1, 0], sizes = [1, 8], strides = [1, 1]} : vector<2x8xf32> to vector<1x8xf32>
    %287 = vector.extract_strided_slice %242 {offsets = [8, 0], sizes = [8, 16], strides = [1, 1]} : vector<16x96xbf16> to vector<8x16xbf16>
    %288 = vector.extract_strided_slice %242 {offsets = [8, 32], sizes = [8, 16], strides = [1, 1]} : vector<16x96xbf16> to vector<8x16xbf16>
    %289 = vector.extract_strided_slice %242 {offsets = [8, 64], sizes = [8, 16], strides = [1, 1]} : vector<16x96xbf16> to vector<8x16xbf16>
    %cst_124 = arith.constant dense<0.000000e+00> : vector<8x8xf32>
    %290 = tpu.matmul %287, %288, %cst_124 {dimension_numbers = #tpu.dot_dimension_numbers<[1], [1], [0], [0], [0, 0, 1, 0], [], []>} : vector<8x16xbf16>, vector<8x16xbf16>, vector<8x8xf32> -> vector<8x8xf32>
    %cst_125 = arith.constant 2.500000e-01 : f32
    %291 = vector.broadcast %cst_125 : f32 to vector<8x8xf32>
    %292 = arith.mulf %290, %291 : vector<8x8xf32>
    %293 = vector.broadcast %286 : vector<1x8xf32> to vector<8x8xf32>
    %294 = arith.addf %292, %293 : vector<8x8xf32>
    %cst_126 = arith.constant dense<0xFF800000> : vector<8xf32>
    %295 = vector.multi_reduction <maximumf>, %294, %cst_126 [1] : vector<8x8xf32> to vector<8xf32>
    %296 = vector.shape_cast %295 : vector<8xf32> to vector<8x1xf32>
    %297 = vector.broadcast %296 : vector<8x1xf32> to vector<8x8xf32>
    %298 = arith.subf %294, %297 : vector<8x8xf32>
    %299 = math.exp %298 : vector<8x8xf32>
    %cst_127 = arith.constant dense<0.000000e+00> : vector<8xf32>
    %300 = vector.multi_reduction <add>, %299, %cst_127 [1] : vector<8x8xf32> to vector<8xf32>
    %301 = vector.shape_cast %300 : vector<8xf32> to vector<8x1xf32>
    %302 = tpu.reciprocal %301 {approx = true} : vector<8x1xf32> -> vector<8x1xf32>
    %303 = vector.broadcast %302 : vector<8x1xf32> to vector<8x8xf32>
    %304 = arith.mulf %299, %303 : vector<8x8xf32>
    %305 = arith.truncf %304 : vector<8x8xf32> to vector<8x8xbf16>
    %cst_128 = arith.constant dense<0.000000e+00> : vector<8x16xf32>
    %306 = tpu.matmul %305, %289, %cst_128 {dimension_numbers = #tpu.dot_dimension_numbers<[1], [0], [0], [1], [0, 0, 1, 1], [], []>} : vector<8x8xbf16>, vector<8x16xbf16>, vector<8x16xf32> -> vector<8x16xf32>
    %c8_129 = arith.constant 8 : index
    %c0_130 = arith.constant 0 : index
    %307 = vector.load %arg21[%c8_129, %c0_130] : memref<16x32xf32, #tpu.memory_space<vmem>>, vector<8x16xf32>
    tpu.vector_store %arg21[%c8_129, %c0_130], %306 {strides = array<i32>} : memref<16x32xf32, #tpu.memory_space<vmem>>, vector<8x16xf32>,
    %308 = vector.extract_strided_slice %242 {offsets = [8, 16], sizes = [8, 16], strides = [1, 1]} : vector<16x96xbf16> to vector<8x16xbf16>
    %309 = vector.extract_strided_slice %242 {offsets = [8, 48], sizes = [8, 16], strides = [1, 1]} : vector<16x96xbf16> to vector<8x16xbf16>
    %310 = vector.extract_strided_slice %242 {offsets = [8, 80], sizes = [8, 16], strides = [1, 1]} : vector<16x96xbf16> to vector<8x16xbf16>
    %cst_131 = arith.constant dense<0.000000e+00> : vector<8x8xf32>
    %311 = tpu.matmul %308, %309, %cst_131 {dimension_numbers = #tpu.dot_dimension_numbers<[1], [1], [0], [0], [0, 0, 1, 0], [], []>} : vector<8x16xbf16>, vector<8x16xbf16>, vector<8x8xf32> -> vector<8x8xf32>
    %cst_132 = arith.constant 2.500000e-01 : f32
    %312 = vector.broadcast %cst_132 : f32 to vector<8x8xf32>
    %313 = arith.mulf %311, %312 : vector<8x8xf32>
    %314 = vector.broadcast %286 : vector<1x8xf32> to vector<8x8xf32>
    %315 = arith.addf %313, %314 : vector<8x8xf32>
    %cst_133 = arith.constant dense<0xFF800000> : vector<8xf32>
    %316 = vector.multi_reduction <maximumf>, %315, %cst_133 [1] : vector<8x8xf32> to vector<8xf32>
    %317 = vector.shape_cast %316 : vector<8xf32> to vector<8x1xf32>
    %318 = vector.broadcast %317 : vector<8x1xf32> to vector<8x8xf32>
    %319 = arith.subf %315, %318 : vector<8x8xf32>
    %320 = math.exp %319 : vector<8x8xf32>
    %cst_134 = arith.constant dense<0.000000e+00> : vector<8xf32>
    %321 = vector.multi_reduction <add>, %320, %cst_134 [1] : vector<8x8xf32> to vector<8xf32>
    %322 = vector.shape_cast %321 : vector<8xf32> to vector<8x1xf32>
    %323 = tpu.reciprocal %322 {approx = true} : vector<8x1xf32> -> vector<8x1xf32>
    %324 = vector.broadcast %323 : vector<8x1xf32> to vector<8x8xf32>
    %325 = arith.mulf %320, %324 : vector<8x8xf32>
    %326 = arith.truncf %325 : vector<8x8xf32> to vector<8x8xbf16>
    %cst_135 = arith.constant dense<0.000000e+00> : vector<8x16xf32>
    %327 = tpu.matmul %326, %310, %cst_135 {dimension_numbers = #tpu.dot_dimension_numbers<[1], [0], [0], [1], [0, 0, 1, 1], [], []>} : vector<8x8xbf16>, vector<8x16xbf16>, vector<8x16xf32> -> vector<8x16xf32>
    %c8_136 = arith.constant 8 : index
    %c16_137 = arith.constant 16 : index
    %328 = vector.load %arg21[%c8_136, %c16_137] : memref<16x32xf32, #tpu.memory_space<vmem>>, vector<8x16xf32>
    tpu.vector_store %arg21[%c8_136, %c16_137], %327 {strides = array<i32>} : memref<16x32xf32, #tpu.memory_space<vmem>>, vector<8x16xf32>,
    %c0_138 = arith.constant 0 : index
    %c0_139 = arith.constant 0 : index
    %329 = vector.load %arg21[%c0_138, %c0_139] : memref<16x32xf32, #tpu.memory_space<vmem>>, vector<16x32xf32>
    %330 = arith.truncf %329 : vector<16x32xf32> to vector<16x32xbf16>
    %c1_140 = arith.constant 1 : index
    %c0_141 = arith.constant 0 : index
    %c0_142 = arith.constant 0 : index
    %331 = vector.load %arg6[%c1_140, %c0_141, %c0_142] : memref<2x32x32xbf16, #tpu.memory_space<vmem>>, vector<1x32x32xbf16>
    %332 = vector.shape_cast %331 : vector<1x32x32xbf16> to vector<32x32xbf16>
    %cst_143 = arith.constant dense<0.000000e+00> : vector<16x32xf32>
    %333 = tpu.matmul %330, %332, %cst_143 {dimension_numbers = #tpu.dot_dimension_numbers<[1], [0], [0], [1], [0, 0, 1, 1], [], []>} : vector<16x32xbf16>, vector<32x32xbf16>, vector<16x32xf32> -> vector<16x32xf32>
    %c1_144 = arith.constant 1 : index
    %c0_145 = arith.constant 0 : index
    %c0_146 = arith.constant 0 : index
    %334 = vector.load %arg7[%c1_144, %c0_145, %c0_146] : memref<2x1x32xf32, #tpu.memory_space<vmem>>, vector<1x1x32xf32>
    %335 = vector.shape_cast %334 : vector<1x1x32xf32> to vector<1x32xf32>
    %336 = vector.broadcast %335 : vector<1x32xf32> to vector<16x32xf32>
    %337 = arith.addf %333, %336 : vector<16x32xf32>
    %338 = arith.addf %337, %233 : vector<16x32xf32>
    %c1_147 = arith.constant 1 : index
    %c0_148 = arith.constant 0 : index
    %c0_149 = arith.constant 0 : index
    %339 = vector.load %arg8[%c1_147, %c0_148, %c0_149] : memref<2x1x32xf32, #tpu.memory_space<vmem>>, vector<1x1x32xf32>
    %340 = vector.shape_cast %339 : vector<1x1x32xf32> to vector<1x32xf32>
    %c1_150 = arith.constant 1 : index
    %c0_151 = arith.constant 0 : index
    %c0_152 = arith.constant 0 : index
    %341 = vector.load %arg9[%c1_150, %c0_151, %c0_152] : memref<2x1x32xf32, #tpu.memory_space<vmem>>, vector<1x1x32xf32>
    %342 = vector.shape_cast %341 : vector<1x1x32xf32> to vector<1x32xf32>
    %cst_153 = arith.constant dense<0.000000e+00> : vector<16xf32>
    %343 = vector.multi_reduction <add>, %338, %cst_153 [1] : vector<16x32xf32> to vector<16xf32>
    %344 = vector.shape_cast %343 : vector<16xf32> to vector<16x1xf32>
    %cst_154 = arith.constant 3.200000e+01 : f32
    %345 = vector.broadcast %cst_154 : f32 to vector<16x1xf32>
    %346 = arith.divf %344, %345 : vector<16x1xf32>
    %347 = vector.broadcast %346 : vector<16x1xf32> to vector<16x32xf32>
    %348 = arith.subf %338, %347 : vector<16x32xf32>
    %349 = arith.mulf %348, %348 : vector<16x32xf32>
    %cst_155 = arith.constant dense<0.000000e+00> : vector<16xf32>
    %350 = vector.multi_reduction <add>, %349, %cst_155 [1] : vector<16x32xf32> to vector<16xf32>
    %351 = vector.shape_cast %350 : vector<16xf32> to vector<16x1xf32>
    %cst_156 = arith.constant 3.200000e+01 : f32
    %352 = vector.broadcast %cst_156 : f32 to vector<16x1xf32>
    %353 = arith.divf %351, %352 : vector<16x1xf32>
    %cst_157 = arith.constant 9.99999996E-13 : f32
    %354 = vector.broadcast %cst_157 : f32 to vector<16x1xf32>
    %355 = arith.addf %353, %354 : vector<16x1xf32>
    %356 = math.rsqrt %355 : vector<16x1xf32>
    %357 = vector.broadcast %356 : vector<16x1xf32> to vector<16x32xf32>
    %358 = arith.mulf %348, %357 : vector<16x32xf32>
    %359 = vector.broadcast %340 : vector<1x32xf32> to vector<16x32xf32>
    %360 = arith.mulf %358, %359 : vector<16x32xf32>
    %361 = vector.broadcast %342 : vector<1x32xf32> to vector<16x32xf32>
    %362 = arith.addf %360, %361 : vector<16x32xf32>
    %363 = arith.truncf %362 : vector<16x32xf32> to vector<16x32xbf16>
    %c1_158 = arith.constant 1 : index
    %c0_159 = arith.constant 0 : index
    %c0_160 = arith.constant 0 : index
    %364 = vector.load %arg10[%c1_158, %c0_159, %c0_160] : memref<2x32x64xbf16, #tpu.memory_space<vmem>>, vector<1x32x64xbf16>
    %365 = vector.shape_cast %364 : vector<1x32x64xbf16> to vector<32x64xbf16>
    %cst_161 = arith.constant dense<0.000000e+00> : vector<16x64xf32>
    %366 = tpu.matmul %363, %365, %cst_161 {dimension_numbers = #tpu.dot_dimension_numbers<[1], [0], [0], [1], [0, 0, 1, 1], [], []>} : vector<16x32xbf16>, vector<32x64xbf16>, vector<16x64xf32> -> vector<16x64xf32>
    %c1_162 = arith.constant 1 : index
    %c0_163 = arith.constant 0 : index
    %c0_164 = arith.constant 0 : index
    %367 = vector.load %arg11[%c1_162, %c0_163, %c0_164] : memref<2x1x64xf32, #tpu.memory_space<vmem>>, vector<1x1x64xf32>
    %368 = vector.shape_cast %367 : vector<1x1x64xf32> to vector<1x64xf32>
    %369 = vector.broadcast %368 : vector<1x64xf32> to vector<16x64xf32>
    %370 = arith.addf %366, %369 : vector<16x64xf32>
    %cst_165 = arith.constant 5.000000e-01 : f32
    %371 = vector.broadcast %cst_165 : f32 to vector<16x64xf32>
    %372 = arith.mulf %371, %370 : vector<16x64xf32>
    %cst_166 = arith.constant 0.707106769 : f32
    %373 = vector.broadcast %cst_166 : f32 to vector<16x64xf32>
    %374 = arith.mulf %370, %373 : vector<16x64xf32>
    %375 = math.absf %374 : vector<16x64xf32>
    %cst_167 = arith.constant 0.327591091 : f32
    %376 = vector.broadcast %cst_167 : f32 to vector<16x64xf32>
    %377 = arith.mulf %376, %375 : vector<16x64xf32>
    %cst_168 = arith.constant 1.000000e+00 : f32
    %378 = vector.broadcast %cst_168 : f32 to vector<16x64xf32>
    %379 = arith.addf %378, %377 : vector<16x64xf32>
    %cst_169 = arith.constant 1.000000e+00 : f32
    %380 = vector.broadcast %cst_169 : f32 to vector<16x64xf32>
    %381 = arith.divf %380, %379 : vector<16x64xf32>
    %cst_170 = arith.constant 1.06140542 : f32
    %382 = vector.broadcast %cst_170 : f32 to vector<16x64xf32>
    %383 = arith.mulf %382, %381 : vector<16x64xf32>
    %cst_171 = arith.constant -1.45315206 : f32
    %384 = vector.broadcast %cst_171 : f32 to vector<16x64xf32>
    %385 = arith.addf %383, %384 : vector<16x64xf32>
    %386 = arith.mulf %385, %381 : vector<16x64xf32>
    %cst_172 = arith.constant 1.42141378 : f32
    %387 = vector.broadcast %cst_172 : f32 to vector<16x64xf32>
    %388 = arith.addf %386, %387 : vector<16x64xf32>
    %389 = arith.mulf %388, %381 : vector<16x64xf32>
    %cst_173 = arith.constant -0.284496725 : f32
    %390 = vector.broadcast %cst_173 : f32 to vector<16x64xf32>
    %391 = arith.addf %389, %390 : vector<16x64xf32>
    %392 = arith.mulf %391, %381 : vector<16x64xf32>
    %cst_174 = arith.constant 0.254829586 : f32
    %393 = vector.broadcast %cst_174 : f32 to vector<16x64xf32>
    %394 = arith.addf %392, %393 : vector<16x64xf32>
    %395 = arith.mulf %394, %381 : vector<16x64xf32>
    %396 = arith.mulf %375, %375 : vector<16x64xf32>
    %cst_175 = arith.constant 0.000000e+00 : f32
    %397 = vector.broadcast %cst_175 : f32 to vector<16x64xf32>
    %398 = arith.subf %397, %396 : vector<16x64xf32>
    %399 = math.exp %398 : vector<16x64xf32>
    %400 = arith.mulf %395, %399 : vector<16x64xf32>
    %cst_176 = arith.constant 1.000000e+00 : f32
    %401 = vector.broadcast %cst_176 : f32 to vector<16x64xf32>
    %402 = arith.subf %401, %400 : vector<16x64xf32>
    %cst_177 = arith.constant 0.000000e+00 : f32
    %403 = vector.broadcast %cst_177 : f32 to vector<16x64xf32>
    %404 = arith.cmpf olt, %374, %403 : vector<16x64xf32>
    %cst_178 = arith.constant 0.000000e+00 : f32
    %405 = vector.broadcast %cst_178 : f32 to vector<16x64xf32>
    %406 = arith.subf %405, %402 : vector<16x64xf32>
    %407 = arith.select %404, %406, %402 : vector<16x64xi1>, vector<16x64xf32>
    %cst_179 = arith.constant 1.000000e+00 : f32
    %408 = vector.broadcast %cst_179 : f32 to vector<16x64xf32>
    %409 = arith.addf %408, %407 : vector<16x64xf32>
    %410 = arith.mulf %372, %409 : vector<16x64xf32>
    %411 = arith.truncf %410 : vector<16x64xf32> to vector<16x64xbf16>
    %c1_180 = arith.constant 1 : index
    %c0_181 = arith.constant 0 : index
    %c0_182 = arith.constant 0 : index
    %412 = vector.load %arg12[%c1_180, %c0_181, %c0_182] : memref<2x64x32xbf16, #tpu.memory_space<vmem>>, vector<1x64x32xbf16>
    %413 = vector.shape_cast %412 : vector<1x64x32xbf16> to vector<64x32xbf16>
    %cst_183 = arith.constant dense<0.000000e+00> : vector<16x32xf32>
    %414 = tpu.matmul %411, %413, %cst_183 {dimension_numbers = #tpu.dot_dimension_numbers<[1], [0], [0], [1], [0, 0, 1, 1], [], []>} : vector<16x64xbf16>, vector<64x32xbf16>, vector<16x32xf32> -> vector<16x32xf32>
    %c1_184 = arith.constant 1 : index
    %c0_185 = arith.constant 0 : index
    %c0_186 = arith.constant 0 : index
    %415 = vector.load %arg13[%c1_184, %c0_185, %c0_186] : memref<2x1x32xf32, #tpu.memory_space<vmem>>, vector<1x1x32xf32>
    %416 = vector.shape_cast %415 : vector<1x1x32xf32> to vector<1x32xf32>
    %417 = vector.broadcast %416 : vector<1x32xf32> to vector<16x32xf32>
    %418 = arith.addf %414, %417 : vector<16x32xf32>
    %419 = arith.addf %418, %362 : vector<16x32xf32>
    %c1_187 = arith.constant 1 : index
    %c0_188 = arith.constant 0 : index
    %c0_189 = arith.constant 0 : index
    %420 = vector.load %arg14[%c1_187, %c0_188, %c0_189] : memref<2x1x32xf32, #tpu.memory_space<vmem>>, vector<1x1x32xf32>
    %421 = vector.shape_cast %420 : vector<1x1x32xf32> to vector<1x32xf32>
    %c1_190 = arith.constant 1 : index
    %c0_191 = arith.constant 0 : index
    %c0_192 = arith.constant 0 : index
    %422 = vector.load %arg15[%c1_190, %c0_191, %c0_192] : memref<2x1x32xf32, #tpu.memory_space<vmem>>, vector<1x1x32xf32>
    %423 = vector.shape_cast %422 : vector<1x1x32xf32> to vector<1x32xf32>
    %cst_193 = arith.constant dense<0.000000e+00> : vector<16xf32>
    %424 = vector.multi_reduction <add>, %419, %cst_193 [1] : vector<16x32xf32> to vector<16xf32>
    %425 = vector.shape_cast %424 : vector<16xf32> to vector<16x1xf32>
    %cst_194 = arith.constant 3.200000e+01 : f32
    %426 = vector.broadcast %cst_194 : f32 to vector<16x1xf32>
    %427 = arith.divf %425, %426 : vector<16x1xf32>
    %428 = vector.broadcast %427 : vector<16x1xf32> to vector<16x32xf32>
    %429 = arith.subf %419, %428 : vector<16x32xf32>
    %430 = arith.mulf %429, %429 : vector<16x32xf32>
    %cst_195 = arith.constant dense<0.000000e+00> : vector<16xf32>
    %431 = vector.multi_reduction <add>, %430, %cst_195 [1] : vector<16x32xf32> to vector<16xf32>
    %432 = vector.shape_cast %431 : vector<16xf32> to vector<16x1xf32>
    %cst_196 = arith.constant 3.200000e+01 : f32
    %433 = vector.broadcast %cst_196 : f32 to vector<16x1xf32>
    %434 = arith.divf %432, %433 : vector<16x1xf32>
    %cst_197 = arith.constant 9.99999996E-13 : f32
    %435 = vector.broadcast %cst_197 : f32 to vector<16x1xf32>
    %436 = arith.addf %434, %435 : vector<16x1xf32>
    %437 = math.rsqrt %436 : vector<16x1xf32>
    %438 = vector.broadcast %437 : vector<16x1xf32> to vector<16x32xf32>
    %439 = arith.mulf %429, %438 : vector<16x32xf32>
    %440 = vector.broadcast %421 : vector<1x32xf32> to vector<16x32xf32>
    %441 = arith.mulf %439, %440 : vector<16x32xf32>
    %442 = vector.broadcast %423 : vector<1x32xf32> to vector<16x32xf32>
    %443 = arith.addf %441, %442 : vector<16x32xf32>
    %c0_198 = arith.constant 0 : index
    %c0_199 = arith.constant 0 : index
    %444 = vector.load %arg22[%c0_198, %c0_199] : memref<16x32xf32, #tpu.memory_space<vmem>>, vector<16x32xf32>
    tpu.vector_store %arg22[%c0_198, %c0_199], %443 {strides = array<i32>} : memref<16x32xf32, #tpu.memory_space<vmem>>, vector<16x32xf32>,
    %c0_200 = arith.constant 0 : index
    %c0_201 = arith.constant 0 : index
    %445 = tpu.strided_load %arg22[%c0_200, %c0_201] {strides = array<i32: 8, 1>} : memref<16x32xf32, #tpu.memory_space<vmem>>, vector<2x32xf32>
    %446 = arith.truncf %445 : vector<2x32xf32> to vector<2x32xbf16>
    %c0_202 = arith.constant 0 : index
    %c0_203 = arith.constant 0 : index
    %447 = vector.load %arg16[%c0_202, %c0_203] : memref<32x32xbf16, #tpu.memory_space<vmem>>, vector<32x32xbf16>
    %cst_204 = arith.constant dense<0.000000e+00> : vector<2x32xf32>
    %448 = tpu.matmul %446, %447, %cst_204 {dimension_numbers = #tpu.dot_dimension_numbers<[1], [0], [0], [1], [0, 0, 1, 1], [], []>} : vector<2x32xbf16>, vector<32x32xbf16>, vector<2x32xf32> -> vector<2x32xf32>
    %c0_205 = arith.constant 0 : index
    %c0_206 = arith.constant 0 : index
    %449 = vector.load %arg17[%c0_205, %c0_206] : memref<1x32xf32, #tpu.memory_space<vmem>>, vector<1x32xf32>
    %450 = vector.broadcast %449 : vector<1x32xf32> to vector<2x32xf32>
    %451 = arith.addf %448, %450 : vector<2x32xf32>
    %452 = math.tanh %451 : vector<2x32xf32>
    %453 = arith.truncf %452 : vector<2x32xf32> to vector<2x32xbf16>
    %c0_207 = arith.constant 0 : index
    %c0_208 = arith.constant 0 : index
    %454 = vector.load %arg18[%c0_207, %c0_208] : memref<32x8xbf16, #tpu.memory_space<vmem>>, vector<32x8xbf16>
    %cst_209 = arith.constant dense<0.000000e+00> : vector<2x8xf32>
    %455 = tpu.matmul %453, %454, %cst_209 {dimension_numbers = #tpu.dot_dimension_numbers<[1], [0], [0], [1], [0, 0, 1, 1], [], []>} : vector<2x32xbf16>, vector<32x8xbf16>, vector<2x8xf32> -> vector<2x8xf32>
    %c0_210 = arith.constant 0 : index
    %c0_211 = arith.constant 0 : index
    %456 = vector.load %arg19[%c0_210, %c0_211] : memref<1x8xf32, #tpu.memory_space<vmem>>, vector<1x8xf32>
    %457 = vector.broadcast %456 : vector<1x8xf32> to vector<2x8xf32>
    %458 = arith.addf %455, %457 : vector<2x8xf32>
    %c0_212 = arith.constant 0 : index
    %c0_213 = arith.constant 0 : index
    %459 = vector.load %arg20[%c0_212, %c0_213] : memref<2x8xf32, #tpu.memory_space<vmem>>, vector<2x8xf32>
    tpu.vector_store %arg20[%c0_212, %c0_213], %458 {strides = array<i32>} : memref<2x8xf32, #tpu.memory_space<vmem>>, vector<2x8xf32>,
    return
  }
}

</mosaic_0001>

<llo_original>
// kernel: _forward.1
$region0: #{_forward.1}
  #allocation0 [shape = 'u32[]', space=smem, size = 0x4, offset = 0x4, fixed_abs, tag = 'smem constant byte address 0x4 - core index']
  #allocation1 [shape = 'u32[144,128]{1,0:T(1,128)}', space=vmem, size = 0x12000, scoped, tag = 'internal scratch']
  #allocation2 [shape = 'f32[16,32]{1,0:T(8,128)}', space=vmem, size = 0x2000, scoped, tag = 'scratch operand']
  #allocation3 [shape = 'f32[16,32]{1,0:T(8,128)}', space=vmem, size = 0x2000, scoped, tag = 'scratch operand']
  %s0 = inlined_call_operand.vmem [shape: f32[16,32], index: 0, kind: input, shape index: {}]
  %s1 = inlined_call_operand.vmem [shape: f32[2,8], index: 1, kind: input, shape index: {}]
  %s2 = inlined_call_operand.vmem [shape: f32[1,32], index: 2, kind: input, shape index: {}]
  %s3 = inlined_call_operand.vmem [shape: f32[1,32], index: 3, kind: input, shape index: {}]
  %s4 = inlined_call_operand.vmem [shape: bf16[2,32,96], index: 4, kind: input, shape index: {}]
  %s5 = inlined_call_operand.vmem [shape: f32[2,1,96], index: 5, kind: input, shape index: {}]
  %s6 = inlined_call_operand.vmem [shape: bf16[2,32,32], index: 6, kind: input, shape index: {}]
  %s7 = inlined_call_operand.vmem [shape: f32[2,1,32], index: 7, kind: input, shape index: {}]
  %s8 = inlined_call_operand.vmem [shape: f32[2,1,32], index: 8, kind: input, shape index: {}]
  %s9 = inlined_call_operand.vmem [shape: f32[2,1,32], index: 9, kind: input, shape index: {}]
  %s10 = inlined_call_operand.vmem [shape: bf16[2,32,64], index: 10, kind: input, shape index: {}]
  %s11 = inlined_call_operand.vmem [shape: f32[2,1,64], index: 11, kind: input, shape index: {}]
  %s12 = inlined_call_operand.vmem [shape: bf16[2,64,32], index: 12, kind: input, shape index: {}]
  %s13 = inlined_call_operand.vmem [shape: f32[2,1,32], index: 13, kind: input, shape index: {}]
  %s14 = inlined_call_operand.vmem [shape: f32[2,1,32], index: 14, kind: input, shape index: {}]
  %s15 = inlined_call_operand.vmem [shape: f32[2,1,32], index: 15, kind: input, shape index: {}]
  %s16 = inlined_call_operand.vmem [shape: bf16[32,32], index: 16, kind: input, shape index: {}]
  %s17 = inlined_call_operand.vmem [shape: f32[1,32], index: 17, kind: input, shape index: {}]
  %s18 = inlined_call_operand.vmem [shape: bf16[32,8], index: 18, kind: input, shape index: {}]
  %s19 = inlined_call_operand.vmem [shape: f32[1,8], index: 19, kind: input, shape index: {}]
  %s20 = inlined_call_operand.vmem [shape: f32[2,8], index: 20, kind: output, shape index: {}]
  %s21 = sld [smem:[#allocation0]]
  $region90: #{_forward.1} parent=0
    _
  %s23 = ssub.s32 1, %s21
  %s24 = scalar_select 0, %s23, %s21
  // Predicated region
  $region2: #{_forward.1} parent=0 // pred_check
    _
  $region3: #{_forward.1} parent=0 // pred_check_branch
    %26 = sbr.rel (0) target = $region5
  $region4: #{_forward.1} parent=0 // pred_region
    _
  $region5: #{_forward.1} parent=0 // pred_fallthru
    _
  // Predicated region
  $region6: #{_forward.1} parent=0 // pred_check
    _
  $region7: #{_forward.1} parent=0 // pred_check_branch
    %28 = sbr.rel (0) target = $region9
  $region8: #{_forward.1} parent=0 // pred_region
    _
  $region9: #{_forward.1} parent=0 // pred_fallthru
    _
  // Predicated region
  $region10: #{_forward.1} parent=0 // pred_check
    _
  $region11: #{_forward.1} parent=0 // pred_check_branch
    %30 = sbr.rel (0) target = $region13
  $region12: #{_forward.1} parent=0 // pred_region
    _
  $region13: #{_forward.1} parent=0 // pred_fallthru
    _
  // Predicated region
  $region14: #{_forward.1} parent=0 // pred_check
    _
  $region15: #{_forward.1} parent=0 // pred_check_branch
    %32 = sbr.rel (0) target = $region17
  $region16: #{_forward.1} parent=0 // pred_region
    _
  $region17: #{_forward.1} parent=0 // pred_fallthru
    _
  // Predicated region
  $region18: #{_forward.1} parent=0 // pred_check
    _
  $region19: #{_forward.1} parent=0 // pred_check_branch
    %34 = sbr.rel (0) target = $region21
  $region20: #{_forward.1} parent=0 // pred_region
    _
  $region21: #{_forward.1} parent=0 // pred_fallthru
    _
  // Predicated region
  $region22: #{_forward.1} parent=0 // pred_check
    _
  $region23: #{_forward.1} parent=0 // pred_check_branch
    %36 = sbr.rel (0) target = $region25
  $region24: #{_forward.1} parent=0 // pred_region
    _
  $region25: #{_forward.1} parent=0 // pred_fallthru
    _
  // Predicated region
  $region26: #{_forward.1} parent=0 // pred_check
    _
  $region27: #{_forward.1} parent=0 // pred_check_branch
    %38 = sbr.rel (0) target = $region29
  $region28: #{_forward.1} parent=0 // pred_region
    _
  $region29: #{_forward.1} parent=0 // pred_fallthru
    _
  // Predicated region
  $region30: #{_forward.1} parent=0 // pred_check
    _
  $region31: #{_forward.1} parent=0 // pred_check_branch
    %40 = sbr.rel (0) target = $region33
  $region32: #{_forward.1} parent=0 // pred_region
    _
  $region33: #{_forward.1} parent=0 // pred_fallthru
    _
  // Predicated region
  $region34: #{_forward.1} parent=0 // pred_check
    _
  $region35: #{_forward.1} parent=0 // pred_check_branch
    %42 = sbr.rel (0) target = $region37
  $region36: #{_forward.1} parent=0 // pred_region
    _
  $region37: #{_forward.1} parent=0 // pred_fallthru
    _
  // Predicated region
  $region38: #{_forward.1} parent=0 // pred_check
    _
  $region39: #{_forward.1} parent=0 // pred_check_branch
    %44 = sbr.rel (0) target = $region41
  $region40: #{_forward.1} parent=0 // pred_region
    _
  $region41: #{_forward.1} parent=0 // pred_fallthru
    _
  // Predicated region
  $region42: #{_forward.1} parent=0 // pred_check
    _
  $region43: #{_forward.1} parent=0 // pred_check_branch
    %46 = sbr.rel (0) target = $region45
  $region44: #{_forward.1} parent=0 // pred_region
    _
  $region45: #{_forward.1} parent=0 // pred_fallthru
    _
  // Predicated region
  $region46: #{_forward.1} parent=0 // pred_check
    _
  $region47: #{_forward.1} parent=0 // pred_check_branch
    %48 = sbr.rel (0) target = $region49
  $region48: #{_forward.1} parent=0 // pred_region
    _
  $region49: #{_forward.1} parent=0 // pred_fallthru
    _
  // Predicated region
  $region50: #{_forward.1} parent=0 // pred_check
    _
  $region51: #{_forward.1} parent=0 // pred_check_branch
    %50 = sbr.rel (0) target = $region53
  $region52: #{_forward.1} parent=0 // pred_region
    _
  $region53: #{_forward.1} parent=0 // pred_fallthru
    _
  // Predicated region
  $region54: #{_forward.1} parent=0 // pred_check
    _
  $region55: #{_forward.1} parent=0 // pred_check_branch
    %52 = sbr.rel (0) target = $region57
  $region56: #{_forward.1} parent=0 // pred_region
    _
  $region57: #{_forward.1} parent=0 // pred_fallthru
    _
  // Predicated region
  $region58: #{_forward.1} parent=0 // pred_check
    _
  $region59: #{_forward.1} parent=0 // pred_check_branch
    %54 = sbr.rel (0) target = $region61
  $region60: #{_forward.1} parent=0 // pred_region
    _
  $region61: #{_forward.1} parent=0 // pred_fallthru
    _
  // Predicated region
  $region62: #{_forward.1} parent=0 // pred_check
    _
  $region63: #{_forward.1} parent=0 // pred_check_branch
    %56 = sbr.rel (0) target = $region65
  $region64: #{_forward.1} parent=0 // pred_region
    _
  $region65: #{_forward.1} parent=0 // pred_fallthru
    _
  // Predicated region
  $region66: #{_forward.1} parent=0 // pred_check
    _
  $region67: #{_forward.1} parent=0 // pred_check_branch
    %58 = sbr.rel (0) target = $region69
  $region68: #{_forward.1} parent=0 // pred_region
    _
  $region69: #{_forward.1} parent=0 // pred_fallthru
    _
  // Predicated region
  $region70: #{_forward.1} parent=0 // pred_check
    _
  $region71: #{_forward.1} parent=0 // pred_check_branch
    %60 = sbr.rel (0) target = $region73
  $region72: #{_forward.1} parent=0 // pred_region
    _
  $region73: #{_forward.1} parent=0 // pred_fallthru
    _
  // Predicated region
  $region74: #{_forward.1} parent=0 // pred_check
    _
  $region75: #{_forward.1} parent=0 // pred_check_branch
    %62 = sbr.rel (0) target = $region77
  $region76: #{_forward.1} parent=0 // pred_region
    _
  $region77: #{_forward.1} parent=0 // pred_fallthru
    _
  // Predicated region
  $region78: #{_forward.1} parent=0 // pred_check
    _
  $region79: #{_forward.1} parent=0 // pred_check_branch
    %64 = sbr.rel (0) target = $region81
  $region80: #{_forward.1} parent=0 // pred_region
    _
  $region81: #{_forward.1} parent=0 // pred_fallthru
    _
  %v66 = vld [vmem:[%s0] sm:$0xff]
  %v67 = vld [vmem:[%s0 + $0x8] sm:$0xff]
  %v68 = vld [vmem:[%s2] sm:$0x1]
  %v69 = vld [vmem:[%s3] sm:$0x1]
  %vm70 = vcmask 261120
  %v71 = vsel %vm70, %v66, 0.0
  %72 = vadd.xlane.f32.xlu0 %v71
  %v73 = vpop.xlane.xlu0 %72
  %v74 = vsel %vm70, %v67, 0.0
  %75 = vadd.xlane.f32.xlu0 %v74
  %v76 = vpop.xlane.xlu0 %75
  %v77 = vrcp.pop 32.0
  %v78 = vmul.f32 %v73, %v77
  %v79 = vmul.f32 %v76, %v77
  %v80 = vsub.f32 %v66, %v78
  %v81 = vsub.f32 %v67, %v79
  %v82 = vmul.f32 %v80, %v80
  %v83 = vmul.f32 %v81, %v81
  %v84 = vsel %vm70, %v82, 0.0
  %85 = vadd.xlane.f32.xlu0 %v84
  %v86 = vpop.xlane.xlu0 %85
  %v87 = vsel %vm70, %v83, 0.0
  %88 = vadd.xlane.f32.xlu0 %v87
  %v89 = vpop.xlane.xlu0 %88
  %v90 = vmul.f32 %v86, %v77
  %v91 = vmul.f32 %v89, %v77
  %v92 = vadd.f32 %v90, 1e-12
  %v93 = vadd.f32 %v91, 1e-12
  %v94 = vrsqrt.pop %v92
  %v95 = vrsqrt.pop %v93
  %v96 = vmul.f32 %v80, %v94
  %v97 = vmul.f32 %v81, %v95
  %v99 = vlaneseq
  %v100 = vshrl.u32 %v99, 7
  %v101 = vsub.s32 0, %v100
  %v102 = vrot.slane %v68, %v101
  %v104 = vmul.f32 %v96, %v102
  %v105 = vmul.f32 %v97, %v102
  %v107 = vlaneseq
  %v108 = vshrl.u32 %v107, 7
  %v109 = vsub.s32 0, %v108
  %v110 = vrot.slane %v69, %v109
  %v112 = vadd.f32 %v104, %v110
  %v113 = vadd.f32 %v105, %v110
  %v114 = vld [vmem:[%s1] sm:$0x3]
  %v115 = vpack.c.bf16 %v113, %v112
  %v116 = vld [vmem:[%s4] sm:$0xf]
  %v117 = vld [vmem:[%s4 + $0x4] sm:$0xf]
  %v118 = vld [vmem:[%s4 + $0x8] sm:$0xf]
  %v119 = vld [vmem:[%s4 + $0xc] sm:$0xf]
  %v120 = vld [vmem:[%s5] sm:$0x1]
  %v122 = vlaneseq
  %v123 = vshrl.u32 %v122, 7
  %v124 = vsub.s32 0, %v123
  %v125 = vrot.slane %v120, %v124
  %v131 = vunpack.c.l.b16 %v116
  %v132 = vunpack.c.l.b16 %v117
  %v133 = vunpack.c.l.b16 %v118
  %v134 = vunpack.c.l.b16 %v119
  %v135 = vpack.c.b16 %v132, %v131
  %v136 = vpack.c.b16 %v134, %v133
  %v140 = vsel %vm70, %v115, 0
  %142 = vmatprep.subr.bf16.mxu0 0
  %143 = vmatpush1.bf16.msra.mxu0 %v135
  %144 = vmatprep.subr.bf16.mxu0 0
  %145 = vmatpush1.bf16.msra.mxu0 %v136
  %146 = vmatprep.subr.bf16.mxu0 0
  %147 = vmatpush1.bf16.msra.mxu0 0
  %148 = vmatprep.subr.bf16.mxu0 0
  %149 = vmatpush1.bf16.msra.mxu0 0
  %150 = vmatprep.subr.bf16.mxu0 0
  %151 = vmatpush1.bf16.msra.mxu0 0
  %152 = vmatprep.subr.bf16.mxu0 0
  %153 = vmatpush1.bf16.msra.mxu0 0
  %154 = vmatprep.subr.bf16.mxu0 0
  %155 = vmatpush1.bf16.msra.mxu0 0
  %156 = vmatprep.subr.bf16.mxu0 0
  %157 = vmatpush1.bf16.msra.mxu0 0
  %158 = vmatprep.subr.bf16.mxu0 0
  %159 = vmatpush1.bf16.msra.mxu0 0
  %160 = vmatprep.subr.bf16.mxu0 0
  %161 = vmatpush1.bf16.msra.mxu0 0
  %162 = vmatprep.subr.bf16.mxu0 0
  %163 = vmatpush1.bf16.msra.mxu0 0
  %164 = vmatprep.subr.bf16.mxu0 0
  %165 = vmatpush1.bf16.msra.mxu0 0
  %166 = vmatprep.subr.bf16.mxu0 0
  %167 = vmatpush1.bf16.msra.mxu0 0
  %168 = vmatprep.subr.bf16.mxu0 0
  %169 = vmatpush1.bf16.msra.mxu0 0
  %170 = vmatprep.subr.bf16.mxu0 0
  %171 = vmatpush1.bf16.msra.mxu0 0
  %172 = vmatprep.subr.bf16.mxu0 0
  %173 = vmatpush1.bf16.msra.mxu0 0
  %174 = vmatprep.mubr.bf16.mxu0 0
  %175 = vmatmul.mubr.bf16.gmra.mrb[0].mxu0 %v140
  %v176 = vpop.f32.mrb[0].mxu0
  %v177 = vadd.f32 %v125, %v176
  %v178 = vpop.f32.mrb[0].mxu0
  %v179 = vpop.f32.mrb[0].mxu0
  %v180 = vadd.f32 %v125, %v179
  %v181 = vpop.f32.mrb[0].mxu0
  %182 = vdwg.mxu0
  %v183 = vpack.c.bf16 %v180, %v177
  %185 = vrot.lane.b32.xlu0 %v183, 96
  %v186 = vpop.permute.xlu0 %185
  %vm187 = vcmask 130048
  %v189 = vsel %vm187, %v183, 0
  %v192 = vsel %vm187, %v186, 0
  %194 = vmatprep.subr.bf16.mxu0 0
  %195 = vmatpush1.bf16.xpose.msra.mxu0 %v192
  %196 = vmatprep.subr.bf16.mxu0 0
  %197 = vmatpush1.bf16.xpose.msra.mxu0 0
  %198 = vmatprep.subr.bf16.mxu0 0
  %199 = vmatpush1.bf16.xpose.msra.mxu0 0
  %200 = vmatprep.subr.bf16.mxu0 0
  %201 = vmatpush1.bf16.xpose.msra.mxu0 0
  %202 = vmatprep.subr.bf16.mxu0 0
  %203 = vmatpush1.bf16.xpose.msra.mxu0 0
  %204 = vmatprep.subr.bf16.mxu0 0
  %205 = vmatpush1.bf16.xpose.msra.mxu0 0
  %206 = vmatprep.subr.bf16.mxu0 0
  %207 = vmatpush1.bf16.xpose.msra.mxu0 0
  %208 = vmatprep.subr.bf16.mxu0 0
  %209 = vmatpush1.bf16.xpose.msra.mxu0 0
  %210 = vmatprep.subr.bf16.mxu0 0
  %211 = vmatpush1.bf16.xpose.msra.mxu0 0
  %212 = vmatprep.subr.bf16.mxu0 0
  %213 = vmatpush1.bf16.xpose.msra.mxu0 0
  %214 = vmatprep.subr.bf16.mxu0 0
  %215 = vmatpush1.bf16.xpose.msra.mxu0 0
  %216 = vmatprep.subr.bf16.mxu0 0
  %217 = vmatpush1.bf16.xpose.msra.mxu0 0
  %218 = vmatprep.subr.bf16.mxu0 0
  %219 = vmatpush1.bf16.xpose.msra.mxu0 0
  %220 = vmatprep.subr.bf16.mxu0 0
  %221 = vmatpush1.bf16.xpose.msra.mxu0 0
  %222 = vmatprep.subr.bf16.mxu0 0
  %223 = vmatpush1.bf16.xpose.msra.mxu0 0
  %224 = vmatprep.subr.bf16.mxu0 0
  %225 = vmatpush1.bf16.xpose.msra.mxu0 0
  %226 = vmatprep.mubr.bf16.mxu0 0
  %227 = vmatmul.mubr.bf16.gmra.mrb[0].mxu0 %v189
  %v228 = vpop.f32.mrb[0].mxu0
  %v229 = vadd.f32 0.0, %v228
  %v230 = vpop.f32.mrb[0].mxu0
  %v231 = vpop.f32.mrb[0].mxu0
  %v232 = vpop.f32.mrb[0].mxu0
  %233 = vdwg.mxu0
  %v234 = vmul.f32 %v229, 0.25
  %v235 = vlaneseq
  %v236 = vshrl.u32 %v235, 7
  %v237 = vsub.s32 0, %v236
  %v238 = vrot.slane %v114, %v237
  %v239 = vadd.f32 %v234, %v238
  %vm240 = vcmask 64512
  %v241 = vsel %vm240, %v239, -inf
  %242 = vmax.xlane.f32.xlu0 %v241
  %v243 = vpop.xlane.xlu0 %242
  %v244 = vsub.f32 %v239, %v243
  %v245 = vmul.f32 %v244, 1.442695
  %v246 = vpow.pop %v245
  %v247 = vsel %vm240, %v246, 0.0
  %248 = vadd.xlane.f32.xlu0 %v247
  %v249 = vpop.xlane.xlu0 %248
  %v250 = vrcp.pop %v249
  %v251 = vmul.f32 %v246, %v250
  %v252 = vpack.c.bf16 %v251, %v251
  %253 = vrot.lane.b32.xlu0 %v183, 64
  %v254 = vpop.permute.xlu0 %253
  %v256 = vsel %vm240, %v252, 0
  %vm258 = vcmask 1043456
  %v260 = vsel %vm258, %v254, 0
  %262 = vmatprep.subr.bf16.mxu0 0
  %263 = vmatpush1.bf16.msra.mxu0 %v260
  %264 = vmatprep.subr.bf16.mxu0 0
  %265 = vmatpush1.bf16.msra.mxu0 0
  %266 = vmatprep.subr.bf16.mxu0 0
  %267 = vmatpush1.bf16.msra.mxu0 0
  %268 = vmatprep.subr.bf16.mxu0 0
  %269 = vmatpush1.bf16.msra.mxu0 0
  %270 = vmatprep.subr.bf16.mxu0 0
  %271 = vmatpush1.bf16.msra.mxu0 0
  %272 = vmatprep.subr.bf16.mxu0 0
  %273 = vmatpush1.bf16.msra.mxu0 0
  %274 = vmatprep.subr.bf16.mxu0 0
  %275 = vmatpush1.bf16.msra.mxu0 0
  %276 = vmatprep.subr.bf16.mxu0 0
  %277 = vmatpush1.bf16.msra.mxu0 0
  %278 = vmatprep.subr.bf16.mxu0 0
  %279 = vmatpush1.bf16.msra.mxu0 0
  %280 = vmatprep.subr.bf16.mxu0 0
  %281 = vmatpush1.bf16.msra.mxu0 0
  %282 = vmatprep.subr.bf16.mxu0 0
  %283 = vmatpush1.bf16.msra.mxu0 0
  %284 = vmatprep.subr.bf16.mxu0 0
  %285 = vmatpush1.bf16.msra.mxu0 0
  %286 = vmatprep.subr.bf16.mxu0 0
  %287 = vmatpush1.bf16.msra.mxu0 0
  %288 = vmatprep.subr.bf16.mxu0 0
  %289 = vmatpush1.bf16.msra.mxu0 0
  %290 = vmatprep.subr.bf16.mxu0 0
  %291 = vmatpush1.bf16.msra.mxu0 0
  %292 = vmatprep.subr.bf16.mxu0 0
  %293 = vmatpush1.bf16.msra.mxu0 0
  %294 = vmatprep.mubr.bf16.mxu0 0
  %295 = vmatmul.mubr.bf16.gmra.mrb[0].mxu0 %v256
  %v296 = vpop.f32.mrb[0].mxu0
  %v297 = vadd.f32 0.0, %v296
  %v298 = vpop.f32.mrb[0].mxu0
  %v299 = vpop.f32.mrb[0].mxu0
  %v300 = vpop.f32.mrb[0].mxu0
  %301 = vdwg.mxu0
  %302 = vst.msk [vmem:[#allocation2] sm:$0xff] %vm187, %v297
  %303 = vrot.lane.b32.xlu0 %v183, 112
  %v304 = vpop.permute.xlu0 %303
  %305 = vrot.lane.b32.xlu0 %v183, 80
  %v306 = vpop.permute.xlu0 %305
  %v308 = vsel %vm187, %v304, 0
  %v311 = vsel %vm187, %v306, 0
  %313 = vmatprep.subr.bf16.mxu0 0
  %314 = vmatpush1.bf16.xpose.msra.mxu0 %v311
  %315 = vmatprep.subr.bf16.mxu0 0
  %316 = vmatpush1.bf16.xpose.msra.mxu0 0
  %317 = vmatprep.subr.bf16.mxu0 0
  %318 = vmatpush1.bf16.xpose.msra.mxu0 0
  %319 = vmatprep.subr.bf16.mxu0 0
  %320 = vmatpush1.bf16.xpose.msra.mxu0 0
  %321 = vmatprep.subr.bf16.mxu0 0
  %322 = vmatpush1.bf16.xpose.msra.mxu0 0
  %323 = vmatprep.subr.bf16.mxu0 0
  %324 = vmatpush1.bf16.xpose.msra.mxu0 0
  %325 = vmatprep.subr.bf16.mxu0 0
  %326 = vmatpush1.bf16.xpose.msra.mxu0 0
  %327 = vmatprep.subr.bf16.mxu0 0
  %328 = vmatpush1.bf16.xpose.msra.mxu0 0
  %329 = vmatprep.subr.bf16.mxu0 0
  %330 = vmatpush1.bf16.xpose.msra.mxu0 0
  %331 = vmatprep.subr.bf16.mxu0 0
  %332 = vmatpush1.bf16.xpose.msra.mxu0 0
  %333 = vmatprep.subr.bf16.mxu0 0
  %334 = vmatpush1.bf16.xpose.msra.mxu0 0
  %335 = vmatprep.subr.bf16.mxu0 0
  %336 = vmatpush1.bf16.xpose.msra.mxu0 0
  %337 = vmatprep.subr.bf16.mxu0 0
  %338 = vmatpush1.bf16.xpose.msra.mxu0 0
  %339 = vmatprep.subr.bf16.mxu0 0
  %340 = vmatpush1.bf16.xpose.msra.mxu0 0
  %341 = vmatprep.subr.bf16.mxu0 0
  %342 = vmatpush1.bf16.xpose.msra.mxu0 0
  %343 = vmatprep.subr.bf16.mxu0 0
  %344 = vmatpush1.bf16.xpose.msra.mxu0 0
  %345 = vmatprep.mubr.bf16.mxu0 0
  %346 = vmatmul.mubr.bf16.gmra.mrb[0].mxu0 %v308
  %v347 = vpop.f32.mrb[0].mxu0
  %v348 = vadd.f32 0.0, %v347
  %v349 = vpop.f32.mrb[0].mxu0
  %v350 = vpop.f32.mrb[0].mxu0
  %v351 = vpop.f32.mrb[0].mxu0
  %352 = vdwg.mxu0
  %v353 = vmul.f32 %v348, 0.25
  %v354 = vadd.f32 %v353, %v238
  %v355 = vsel %vm240, %v354, -inf
  %356 = vmax.xlane.f32.xlu0 %v355
  %v357 = vpop.xlane.xlu0 %356
  %v358 = vsub.f32 %v354, %v357
  %v359 = vmul.f32 %v358, 1.442695
  %v360 = vpow.pop %v359
  %v361 = vsel %vm240, %v360, 0.0
  %362 = vadd.xlane.f32.xlu0 %v361
  %v363 = vpop.xlane.xlu0 %362
  %v364 = vrcp.pop %v363
  %v365 = vmul.f32 %v360, %v364
  %v366 = vpack.c.bf16 %v365, %v365
  %367 = vrot.lane.b32.xlu0 %v183, 48
  %v368 = vpop.permute.xlu0 %367
  %v370 = vsel %vm240, %v366, 0
  %v373 = vsel %vm258, %v368, 0
  %375 = vmatprep.subr.bf16.mxu0 0
  %376 = vmatpush1.bf16.msra.mxu0 %v373
  %377 = vmatprep.subr.bf16.mxu0 0
  %378 = vmatpush1.bf16.msra.mxu0 0
  %379 = vmatprep.subr.bf16.mxu0 0
  %380 = vmatpush1.bf16.msra.mxu0 0
  %381 = vmatprep.subr.bf16.mxu0 0
  %382 = vmatpush1.bf16.msra.mxu0 0
  %383 = vmatprep.subr.bf16.mxu0 0
  %384 = vmatpush1.bf16.msra.mxu0 0
  %385 = vmatprep.subr.bf16.mxu0 0
  %386 = vmatpush1.bf16.msra.mxu0 0
  %387 = vmatprep.subr.bf16.mxu0 0
  %388 = vmatpush1.bf16.msra.mxu0 0
  %389 = vmatprep.subr.bf16.mxu0 0
  %390 = vmatpush1.bf16.msra.mxu0 0
  %391 = vmatprep.subr.bf16.mxu0 0
  %392 = vmatpush1.bf16.msra.mxu0 0
  %393 = vmatprep.subr.bf16.mxu0 0
  %394 = vmatpush1.bf16.msra.mxu0 0
  %395 = vmatprep.subr.bf16.mxu0 0
  %396 = vmatpush1.bf16.msra.mxu0 0
  %397 = vmatprep.subr.bf16.mxu0 0
  %398 = vmatpush1.bf16.msra.mxu0 0
  %399 = vmatprep.subr.bf16.mxu0 0
  %400 = vmatpush1.bf16.msra.mxu0 0
  %401 = vmatprep.subr.bf16.mxu0 0
  %402 = vmatpush1.bf16.msra.mxu0 0
  %403 = vmatprep.subr.bf16.mxu0 0
  %404 = vmatpush1.bf16.msra.mxu0 0
  %405 = vmatprep.subr.bf16.mxu0 0
  %406 = vmatpush1.bf16.msra.mxu0 0
  %407 = vmatprep.mubr.bf16.mxu0 0
  %408 = vmatmul.mubr.bf16.gmra.mrb[0].mxu0 %v370
  %v409 = vpop.f32.mrb[0].mxu0
  %v410 = vadd.f32 0.0, %v409
  %v411 = vpop.f32.mrb[0].mxu0
  %v412 = vpop.f32.mrb[0].mxu0
  %v413 = vpop.f32.mrb[0].mxu0
  %414 = vdwg.mxu0
  %416 = vrot.lane.b32.xlu0 %v410, 16
  %v417 = vpop.permute.xlu0 %416
  %vm419 = vcmask 261248
  %420 = vst.msk [vmem:[#allocation2] sm:$0xff] %vm419, %v417
  %v421 = vrot.slane %v183, 4
  %422 = vrot.lane.b32.xlu0 %v421, 96
  %v423 = vpop.permute.xlu0 %422
  %v425 = vsel %vm187, %v421, 0
  %v428 = vsel %vm187, %v423, 0
  %430 = vmatprep.subr.bf16.mxu0 0
  %431 = vmatpush1.bf16.xpose.msra.mxu0 %v428
  %432 = vmatprep.subr.bf16.mxu0 0
  %433 = vmatpush1.bf16.xpose.msra.mxu0 0
  %434 = vmatprep.subr.bf16.mxu0 0
  %435 = vmatpush1.bf16.xpose.msra.mxu0 0
  %436 = vmatprep.subr.bf16.mxu0 0
  %437 = vmatpush1.bf16.xpose.msra.mxu0 0
  %438 = vmatprep.subr.bf16.mxu0 0
  %439 = vmatpush1.bf16.xpose.msra.mxu0 0
  %440 = vmatprep.subr.bf16.mxu0 0
  %441 = vmatpush1.bf16.xpose.msra.mxu0 0
  %442 = vmatprep.subr.bf16.mxu0 0
  %443 = vmatpush1.bf16.xpose.msra.mxu0 0
  %444 = vmatprep.subr.bf16.mxu0 0
  %445 = vmatpush1.bf16.xpose.msra.mxu0 0
  %446 = vmatprep.subr.bf16.mxu0 0
  %447 = vmatpush1.bf16.xpose.msra.mxu0 0
  %448 = vmatprep.subr.bf16.mxu0 0
  %449 = vmatpush1.bf16.xpose.msra.mxu0 0
  %450 = vmatprep.subr.bf16.mxu0 0
  %451 = vmatpush1.bf16.xpose.msra.mxu0 0
  %452 = vmatprep.subr.bf16.mxu0 0
  %453 = vmatpush1.bf16.xpose.msra.mxu0 0
  %454 = vmatprep.subr.bf16.mxu0 0
  %455 = vmatpush1.bf16.xpose.msra.mxu0 0
  %456 = vmatprep.subr.bf16.mxu0 0
  %457 = vmatpush1.bf16.xpose.msra.mxu0 0
  %458 = vmatprep.subr.bf16.mxu0 0
  %459 = vmatpush1.bf16.xpose.msra.mxu0 0
  %460 = vmatprep.subr.bf16.mxu0 0
  %461 = vmatpush1.bf16.xpose.msra.mxu0 0
  %462 = vmatprep.mubr.bf16.mxu0 0
  %463 = vmatmul.mubr.bf16.gmra.mrb[0].mxu0 %v425
  %v464 = vpop.f32.mrb[0].mxu0
  %v465 = vadd.f32 0.0, %v464
  %v466 = vpop.f32.mrb[0].mxu0
  %v467 = vpop.f32.mrb[0].mxu0
  %v468 = vpop.f32.mrb[0].mxu0
  %469 = vdwg.mxu0
  %v470 = vmul.f32 %v465, 0.25
  %v471 = vlaneseq
  %v472 = vshrl.u32 %v471, 7
  %v473 = vsub.s32 1, %v472
  %v474 = vrot.slane %v114, %v473
  %v475 = vadd.f32 %v470, %v474
  %v476 = vsel %vm240, %v475, -inf
  %477 = vmax.xlane.f32.xlu0 %v476
  %v478 = vpop.xlane.xlu0 %477
  %v479 = vsub.f32 %v475, %v478
  %v480 = vmul.f32 %v479, 1.442695
  %v481 = vpow.pop %v480
  %v482 = vsel %vm240, %v481, 0.0
  %483 = vadd.xlane.f32.xlu0 %v482
  %v484 = vpop.xlane.xlu0 %483
  %v485 = vrcp.pop %v484
  %v486 = vmul.f32 %v481, %v485
  %v487 = vpack.c.bf16 %v486, %v486
  %488 = vrot.lane.b32.xlu0 %v421, 64
  %v489 = vpop.permute.xlu0 %488
  %v491 = vsel %vm240, %v487, 0
  %v494 = vsel %vm258, %v489, 0
  %496 = vmatprep.subr.bf16.mxu0 0
  %497 = vmatpush1.bf16.msra.mxu0 %v494
  %498 = vmatprep.subr.bf16.mxu0 0
  %499 = vmatpush1.bf16.msra.mxu0 0
  %500 = vmatprep.subr.bf16.mxu0 0
  %501 = vmatpush1.bf16.msra.mxu0 0
  %502 = vmatprep.subr.bf16.mxu0 0
  %503 = vmatpush1.bf16.msra.mxu0 0
  %504 = vmatprep.subr.bf16.mxu0 0
  %505 = vmatpush1.bf16.msra.mxu0 0
  %506 = vmatprep.subr.bf16.mxu0 0
  %507 = vmatpush1.bf16.msra.mxu0 0
  %508 = vmatprep.subr.bf16.mxu0 0
  %509 = vmatpush1.bf16.msra.mxu0 0
  %510 = vmatprep.subr.bf16.mxu0 0
  %511 = vmatpush1.bf16.msra.mxu0 0
  %512 = vmatprep.subr.bf16.mxu0 0
  %513 = vmatpush1.bf16.msra.mxu0 0
  %514 = vmatprep.subr.bf16.mxu0 0
  %515 = vmatpush1.bf16.msra.mxu0 0
  %516 = vmatprep.subr.bf16.mxu0 0
  %517 = vmatpush1.bf16.msra.mxu0 0
  %518 = vmatprep.subr.bf16.mxu0 0
  %519 = vmatpush1.bf16.msra.mxu0 0
  %520 = vmatprep.subr.bf16.mxu0 0
  %521 = vmatpush1.bf16.msra.mxu0 0
  %522 = vmatprep.subr.bf16.mxu0 0
  %523 = vmatpush1.bf16.msra.mxu0 0
  %524 = vmatprep.subr.bf16.mxu0 0
  %525 = vmatpush1.bf16.msra.mxu0 0
  %526 = vmatprep.subr.bf16.mxu0 0
  %527 = vmatpush1.bf16.msra.mxu0 0
  %528 = vmatprep.mubr.bf16.mxu0 0
  %529 = vmatmul.mubr.bf16.gmra.mrb[0].mxu0 %v491
  %v530 = vpop.f32.mrb[0].mxu0
  %v531 = vadd.f32 0.0, %v530
  %v532 = vpop.f32.mrb[0].mxu0
  %v533 = vpop.f32.mrb[0].mxu0
  %v534 = vpop.f32.mrb[0].mxu0
  %535 = vdwg.mxu0
  %536 = vst.msk [vmem:[#allocation2 + $0x8] sm:$0xff] %vm187, %v531
  %537 = vrot.lane.b32.xlu0 %v421, 112
  %v538 = vpop.permute.xlu0 %537
  %539 = vrot.lane.b32.xlu0 %v421, 80
  %v540 = vpop.permute.xlu0 %539
  %v542 = vsel %vm187, %v538, 0
  %v545 = vsel %vm187, %v540, 0
  %547 = vmatprep.subr.bf16.mxu0 0
  %548 = vmatpush1.bf16.xpose.msra.mxu0 %v545
  %549 = vmatprep.subr.bf16.mxu0 0
  %550 = vmatpush1.bf16.xpose.msra.mxu0 0
  %551 = vmatprep.subr.bf16.mxu0 0
  %552 = vmatpush1.bf16.xpose.msra.mxu0 0
  %553 = vmatprep.subr.bf16.mxu0 0
  %554 = vmatpush1.bf16.xpose.msra.mxu0 0
  %555 = vmatprep.subr.bf16.mxu0 0
  %556 = vmatpush1.bf16.xpose.msra.mxu0 0
  %557 = vmatprep.subr.bf16.mxu0 0
  %558 = vmatpush1.bf16.xpose.msra.mxu0 0
  %559 = vmatprep.subr.bf16.mxu0 0
  %560 = vmatpush1.bf16.xpose.msra.mxu0 0
  %561 = vmatprep.subr.bf16.mxu0 0
  %562 = vmatpush1.bf16.xpose.msra.mxu0 0
  %563 = vmatprep.subr.bf16.mxu0 0
  %564 = vmatpush1.bf16.xpose.msra.mxu0 0
  %565 = vmatprep.subr.bf16.mxu0 0
  %566 = vmatpush1.bf16.xpose.msra.mxu0 0
  %567 = vmatprep.subr.bf16.mxu0 0
  %568 = vmatpush1.bf16.xpose.msra.mxu0 0
  %569 = vmatprep.subr.bf16.mxu0 0
  %570 = vmatpush1.bf16.xpose.msra.mxu0 0
  %571 = vmatprep.subr.bf16.mxu0 0
  %572 = vmatpush1.bf16.xpose.msra.mxu0 0
  %573 = vmatprep.subr.bf16.mxu0 0
  %574 = vmatpush1.bf16.xpose.msra.mxu0 0
  %575 = vmatprep.subr.bf16.mxu0 0
  %576 = vmatpush1.bf16.xpose.msra.mxu0 0
  %577 = vmatprep.subr.bf16.mxu0 0
  %578 = vmatpush1.bf16.xpose.msra.mxu0 0
  %579 = vmatprep.mubr.bf16.mxu0 0
  %580 = vmatmul.mubr.bf16.gmra.mrb[0].mxu0 %v542
  %v581 = vpop.f32.mrb[0].mxu0
  %v582 = vadd.f32 0.0, %v581
  %v583 = vpop.f32.mrb[0].mxu0
  %v584 = vpop.f32.mrb[0].mxu0
  %v585 = vpop.f32.mrb[0].mxu0
  %586 = vdwg.mxu0
  %v587 = vmul.f32 %v582, 0.25
  %v588 = vadd.f32 %v587, %v474
  %v589 = vsel %vm240, %v588, -inf
  %590 = vmax.xlane.f32.xlu0 %v589
  %v591 = vpop.xlane.xlu0 %590
  %v592 = vsub.f32 %v588, %v591
  %v593 = vmul.f32 %v592, 1.442695
  %v594 = vpow.pop %v593
  %v595 = vsel %vm240, %v594, 0.0
  %596 = vadd.xlane.f32.xlu0 %v595
  %v597 = vpop.xlane.xlu0 %596
  %v598 = vrcp.pop %v597
  %v599 = vmul.f32 %v594, %v598
  %v600 = vpack.c.bf16 %v599, %v599
  %601 = vrot.lane.b32.xlu0 %v421, 48
  %v602 = vpop.permute.xlu0 %601
  %v604 = vsel %vm240, %v600, 0
  %v607 = vsel %vm258, %v602, 0
  %609 = vmatprep.subr.bf16.mxu0 0
  %610 = vmatpush1.bf16.msra.mxu0 %v607
  %611 = vmatprep.subr.bf16.mxu0 0
  %612 = vmatpush1.bf16.msra.mxu0 0
  %613 = vmatprep.subr.bf16.mxu0 0
  %614 = vmatpush1.bf16.msra.mxu0 0
  %615 = vmatprep.subr.bf16.mxu0 0
  %616 = vmatpush1.bf16.msra.mxu0 0
  %617 = vmatprep.subr.bf16.mxu0 0
  %618 = vmatpush1.bf16.msra.mxu0 0
  %619 = vmatprep.subr.bf16.mxu0 0
  %620 = vmatpush1.bf16.msra.mxu0 0
  %621 = vmatprep.subr.bf16.mxu0 0
  %622 = vmatpush1.bf16.msra.mxu0 0
  %623 = vmatprep.subr.bf16.mxu0 0
  %624 = vmatpush1.bf16.msra.mxu0 0
  %625 = vmatprep.subr.bf16.mxu0 0
  %626 = vmatpush1.bf16.msra.mxu0 0
  %627 = vmatprep.subr.bf16.mxu0 0
  %628 = vmatpush1.bf16.msra.mxu0 0
  %629 = vmatprep.subr.bf16.mxu0 0
  %630 = vmatpush1.bf16.msra.mxu0 0
  %631 = vmatprep.subr.bf16.mxu0 0
  %632 = vmatpush1.bf16.msra.mxu0 0
  %633 = vmatprep.subr.bf16.mxu0 0
  %634 = vmatpush1.bf16.msra.mxu0 0
  %635 = vmatprep.subr.bf16.mxu0 0
  %636 = vmatpush1.bf16.msra.mxu0 0
  %637 = vmatprep.subr.bf16.mxu0 0
  %638 = vmatpush1.bf16.msra.mxu0 0
  %639 = vmatprep.subr.bf16.mxu0 0
  %640 = vmatpush1.bf16.msra.mxu0 0
  %641 = vmatprep.mubr.bf16.mxu0 0
  %642 = vmatmul.mubr.bf16.gmra.mrb[0].mxu0 %v604
  %v643 = vpop.f32.mrb[0].mxu0
  %v644 = vadd.f32 0.0, %v643
  %v645 = vpop.f32.mrb[0].mxu0
  %v646 = vpop.f32.mrb[0].mxu0
  %v647 = vpop.f32.mrb[0].mxu0
  %648 = vdwg.mxu0
  %650 = vrot.lane.b32.xlu0 %v644, 16
  %v651 = vpop.permute.xlu0 %650
  %653 = vst.msk [vmem:[#allocation2 + $0x8] sm:$0xff] %vm419, %v651
  %v654 = vld [vmem:[#allocation2] sm:$0xff]
  %v655 = vld [vmem:[#allocation2 + $0x8] sm:$0xff]
  %v656 = vpack.c.bf16 %v655, %v654
  %v657 = vld [vmem:[%s6] sm:$0xf]
  %v658 = vld [vmem:[%s6 + $0x4] sm:$0xf]
  %v659 = vld [vmem:[%s6 + $0x8] sm:$0xf]
  %v660 = vld [vmem:[%s6 + $0xc] sm:$0xf]
  %v661 = vld [vmem:[%s7] sm:$0x1]
  %v663 = vlaneseq
  %v664 = vshrl.u32 %v663, 7
  %v665 = vsub.s32 0, %v664
  %v666 = vrot.slane %v661, %v665
  %v672 = vunpack.c.l.b16 %v657
  %v673 = vunpack.c.l.b16 %v658
  %v674 = vunpack.c.l.b16 %v659
  %v675 = vunpack.c.l.b16 %v660
  %v676 = vpack.c.b16 %v673, %v672
  %v677 = vpack.c.b16 %v675, %v674
  %v681 = vsel %vm70, %v656, 0
  %683 = vmatprep.subr.bf16.mxu0 0
  %684 = vmatpush1.bf16.msra.mxu0 %v676
  %685 = vmatprep.subr.bf16.mxu0 0
  %686 = vmatpush1.bf16.msra.mxu0 %v677
  %687 = vmatprep.subr.bf16.mxu0 0
  %688 = vmatpush1.bf16.msra.mxu0 0
  %689 = vmatprep.subr.bf16.mxu0 0
  %690 = vmatpush1.bf16.msra.mxu0 0
  %691 = vmatprep.subr.bf16.mxu0 0
  %692 = vmatpush1.bf16.msra.mxu0 0
  %693 = vmatprep.subr.bf16.mxu0 0
  %694 = vmatpush1.bf16.msra.mxu0 0
  %695 = vmatprep.subr.bf16.mxu0 0
  %696 = vmatpush1.bf16.msra.mxu0 0
  %697 = vmatprep.subr.bf16.mxu0 0
  %698 = vmatpush1.bf16.msra.mxu0 0
  %699 = vmatprep.subr.bf16.mxu0 0
  %700 = vmatpush1.bf16.msra.mxu0 0
  %701 = vmatprep.subr.bf16.mxu0 0
  %702 = vmatpush1.bf16.msra.mxu0 0
  %703 = vmatprep.subr.bf16.mxu0 0
  %704 = vmatpush1.bf16.msra.mxu0 0
  %705 = vmatprep.subr.bf16.mxu0 0
  %706 = vmatpush1.bf16.msra.mxu0 0
  %707 = vmatprep.subr.bf16.mxu0 0
  %708 = vmatpush1.bf16.msra.mxu0 0
  %709 = vmatprep.subr.bf16.mxu0 0
  %710 = vmatpush1.bf16.msra.mxu0 0
  %711 = vmatprep.subr.bf16.mxu0 0
  %712 = vmatpush1.bf16.msra.mxu0 0
  %713 = vmatprep.subr.bf16.mxu0 0
  %714 = vmatpush1.bf16.msra.mxu0 0
  %715 = vmatprep.mubr.bf16.mxu0 0
  %716 = vmatmul.mubr.bf16.gmra.mrb[0].mxu0 %v681
  %v717 = vpop.f32.mrb[0].mxu0
  %v718 = vadd.f32 %v666, %v717
  %v719 = vpop.f32.mrb[0].mxu0
  %v720 = vpop.f32.mrb[0].mxu0
  %v721 = vadd.f32 %v666, %v720
  %v722 = vpop.f32.mrb[0].mxu0
  %723 = vdwg.mxu0
  %v724 = vadd.f32 %v718, %v112
  %v725 = vadd.f32 %v721, %v113
  %v726 = vld [vmem:[%s8] sm:$0x1]
  %v727 = vld [vmem:[%s9] sm:$0x1]
  %v728 = vsel %vm70, %v724, 0.0
  %729 = vadd.xlane.f32.xlu0 %v728
  %v730 = vpop.xlane.xlu0 %729
  %v731 = vsel %vm70, %v725, 0.0
  %732 = vadd.xlane.f32.xlu0 %v731
  %v733 = vpop.xlane.xlu0 %732
  %v734 = vmul.f32 %v730, %v77
  %v735 = vmul.f32 %v733, %v77
  %v736 = vsub.f32 %v724, %v734
  %v737 = vsub.f32 %v725, %v735
  %v738 = vmul.f32 %v736, %v736
  %v739 = vmul.f32 %v737, %v737
  %v740 = vsel %vm70, %v738, 0.0
  %741 = vadd.xlane.f32.xlu0 %v740
  %v742 = vpop.xlane.xlu0 %741
  %v743 = vsel %vm70, %v739, 0.0
  %744 = vadd.xlane.f32.xlu0 %v743
  %v745 = vpop.xlane.xlu0 %744
  %v746 = vmul.f32 %v742, %v77
  %v747 = vmul.f32 %v745, %v77
  %v748 = vadd.f32 %v746, 1e-12
  %v749 = vadd.f32 %v747, 1e-12
  %v750 = vrsqrt.pop %v748
  %v751 = vrsqrt.pop %v749
  %v752 = vmul.f32 %v736, %v750
  %v753 = vmul.f32 %v737, %v751
  %v755 = vlaneseq
  %v756 = vshrl.u32 %v755, 7
  %v757 = vsub.s32 0, %v756
  %v758 = vrot.slane %v726, %v757
  %v760 = vmul.f32 %v752, %v758
  %v761 = vmul.f32 %v753, %v758
  %v763 = vlaneseq
  %v764 = vshrl.u32 %v763, 7
  %v765 = vsub.s32 0, %v764
  %v766 = vrot.slane %v727, %v765
  %v768 = vadd.f32 %v760, %v766
  %v769 = vadd.f32 %v761, %v766
  %v770 = vpack.c.bf16 %v769, %v768
  %v771 = vld [vmem:[%s10] sm:$0xf]
  %v772 = vld [vmem:[%s10 + $0x4] sm:$0xf]
  %v773 = vld [vmem:[%s10 + $0x8] sm:$0xf]
  %v774 = vld [vmem:[%s10 + $0xc] sm:$0xf]
  %v775 = vld [vmem:[%s11] sm:$0x1]
  %v777 = vlaneseq
  %v778 = vshrl.u32 %v777, 7
  %v779 = vsub.s32 0, %v778
  %v780 = vrot.slane %v775, %v779
  %v786 = vunpack.c.l.b16 %v771
  %v787 = vunpack.c.l.b16 %v772
  %v788 = vunpack.c.l.b16 %v773
  %v789 = vunpack.c.l.b16 %v774
  %v790 = vpack.c.b16 %v787, %v786
  %v791 = vpack.c.b16 %v789, %v788
  %v795 = vsel %vm70, %v770, 0
  %797 = vmatprep.subr.bf16.mxu0 0
  %798 = vmatpush1.bf16.msra.mxu0 %v790
  %799 = vmatprep.subr.bf16.mxu0 0
  %800 = vmatpush1.bf16.msra.mxu0 %v791
  %801 = vmatprep.subr.bf16.mxu0 0
  %802 = vmatpush1.bf16.msra.mxu0 0
  %803 = vmatprep.subr.bf16.mxu0 0
  %804 = vmatpush1.bf16.msra.mxu0 0
  %805 = vmatprep.subr.bf16.mxu0 0
  %806 = vmatpush1.bf16.msra.mxu0 0
  %807 = vmatprep.subr.bf16.mxu0 0
  %808 = vmatpush1.bf16.msra.mxu0 0
  %809 = vmatprep.subr.bf16.mxu0 0
  %810 = vmatpush1.bf16.msra.mxu0 0
  %811 = vmatprep.subr.bf16.mxu0 0
  %812 = vmatpush1.bf16.msra.mxu0 0
  %813 = vmatprep.subr.bf16.mxu0 0
  %814 = vmatpush1.bf16.msra.mxu0 0
  %815 = vmatprep.subr.bf16.mxu0 0
  %816 = vmatpush1.bf16.msra.mxu0 0
  %817 = vmatprep.subr.bf16.mxu0 0
  %818 = vmatpush1.bf16.msra.mxu0 0
  %819 = vmatprep.subr.bf16.mxu0 0
  %820 = vmatpush1.bf16.msra.mxu0 0
  %821 = vmatprep.subr.bf16.mxu0 0
  %822 = vmatpush1.bf16.msra.mxu0 0
  %823 = vmatprep.subr.bf16.mxu0 0
  %824 = vmatpush1.bf16.msra.mxu0 0
  %825 = vmatprep.subr.bf16.mxu0 0
  %826 = vmatpush1.bf16.msra.mxu0 0
  %827 = vmatprep.subr.bf16.mxu0 0
  %828 = vmatpush1.bf16.msra.mxu0 0
  %829 = vmatprep.mubr.bf16.mxu0 0
  %830 = vmatmul.mubr.bf16.gmra.mrb[0].mxu0 %v795
  %v831 = vpop.f32.mrb[0].mxu0
  %v832 = vadd.f32 %v780, %v831
  %v833 = vpop.f32.mrb[0].mxu0
  %v834 = vpop.f32.mrb[0].mxu0
  %v835 = vadd.f32 %v780, %v834
  %v836 = vpop.f32.mrb[0].mxu0
  %837 = vdwg.mxu0
  %v838 = vmul.f32 %v832, 0.5
  %v839 = vmul.f32 %v835, 0.5
  %v840 = vmul.f32 %v832, 0.70710677
  %v841 = vmul.f32 %v835, 0.70710677
  %v842 = vand.u32 2147483647, %v840
  %v843 = vand.u32 2147483647, %v841
  %v844 = vmul.f32 %v842, 0.3275911
  %v845 = vmul.f32 %v843, 0.3275911
  %v846 = vadd.f32 %v844, 1.0
  %v847 = vadd.f32 %v845, 1.0
  %v848 = vrcp.pop %v846
  %v849 = vmul.f32 1.0, %v848
  %v850 = vrcp.pop %v847
  %v851 = vmul.f32 1.0, %v850
  %v852 = vmul.f32 %v849, 1.0614054
  %v853 = vmul.f32 %v851, 1.0614054
  %v854 = vadd.f32 %v852, -1.4531521
  %v855 = vadd.f32 %v853, -1.4531521
  %v856 = vmul.f32 %v854, %v849
  %v857 = vmul.f32 %v855, %v851
  %v858 = vadd.f32 %v856, 1.4214138
  %v859 = vadd.f32 %v857, 1.4214138
  %v860 = vmul.f32 %v858, %v849
  %v861 = vmul.f32 %v859, %v851
  %v862 = vadd.f32 %v860, -0.28449672
  %v863 = vadd.f32 %v861, -0.28449672
  %v864 = vmul.f32 %v862, %v849
  %v865 = vmul.f32 %v863, %v851
  %v866 = vadd.f32 %v864, 0.2548296
  %v867 = vadd.f32 %v865, 0.2548296
  %v868 = vmul.f32 %v866, %v849
  %v869 = vmul.f32 %v867, %v851
  %v870 = vmul.f32 %v842, %v842
  %v871 = vmul.f32 %v843, %v843
  %v872 = vsub.f32 0.0, %v870
  %v873 = vsub.f32 0.0, %v871
  %v874 = vmul.f32 %v872, 1.442695
  %v875 = vpow.pop %v874
  %v876 = vmul.f32 %v873, 1.442695
  %v877 = vpow.pop %v876
  %v878 = vmul.f32 %v868, %v875
  %v879 = vmul.f32 %v869, %v877
  %v880 = vsub.f32 1.0, %v878
  %v881 = vsub.f32 1.0, %v879
  %vm882 = vcmp.lt.f32.partialorder %v840, 0.0
  %vm883 = vcmp.lt.f32.partialorder %v841, 0.0
  %v884 = vsub.f32 0.0, %v880
  %v885 = vsub.f32 0.0, %v881
  %v886 = vsel %vm882, %v884, %v880
  %v887 = vsel %vm883, %v885, %v881
  %v888 = vadd.f32 %v886, 1.0
  %v889 = vadd.f32 %v887, 1.0
  %v890 = vmul.f32 %v838, %v888
  %v891 = vmul.f32 %v839, %v889
  %v892 = vpack.c.bf16 %v891, %v890
  %v893 = vld [vmem:[%s12] sm:$0xf]
  %v894 = vld [vmem:[%s12 + $0x4] sm:$0xf]
  %v895 = vld [vmem:[%s12 + $0x8] sm:$0xf]
  %v896 = vld [vmem:[%s12 + $0xc] sm:$0xf]
  %v897 = vld [vmem:[%s12 + $0x10] sm:$0xf]
  %v898 = vld [vmem:[%s12 + $0x14] sm:$0xf]
  %v899 = vld [vmem:[%s12 + $0x18] sm:$0xf]
  %v900 = vld [vmem:[%s12 + $0x1c] sm:$0xf]
  %v901 = vld [vmem:[%s13] sm:$0x1]
  %v903 = vlaneseq
  %v904 = vshrl.u32 %v903, 7
  %v905 = vsub.s32 0, %v904
  %v906 = vrot.slane %v901, %v905
  %v916 = vunpack.c.l.b16 %v893
  %v917 = vunpack.c.l.b16 %v894
  %v918 = vunpack.c.l.b16 %v895
  %v919 = vunpack.c.l.b16 %v896
  %v920 = vunpack.c.l.b16 %v897
  %v921 = vunpack.c.l.b16 %v898
  %v922 = vunpack.c.l.b16 %v899
  %v923 = vunpack.c.l.b16 %v900
  %v924 = vpack.c.b16 %v917, %v916
  %v925 = vpack.c.b16 %v919, %v918
  %v926 = vpack.c.b16 %v921, %v920
  %v927 = vpack.c.b16 %v923, %v922
  %vm932 = vcmask 523264
  %v934 = vsel %vm932, %v892, 0
  %936 = vmatprep.subr.bf16.mxu0 0
  %937 = vmatpush1.bf16.msra.mxu0 %v924
  %938 = vmatprep.subr.bf16.mxu0 0
  %939 = vmatpush1.bf16.msra.mxu0 %v925
  %940 = vmatprep.subr.bf16.mxu0 0
  %941 = vmatpush1.bf16.msra.mxu0 %v926
  %942 = vmatprep.subr.bf16.mxu0 0
  %943 = vmatpush1.bf16.msra.mxu0 %v927
  %944 = vmatprep.subr.bf16.mxu0 0
  %945 = vmatpush1.bf16.msra.mxu0 0
  %946 = vmatprep.subr.bf16.mxu0 0
  %947 = vmatpush1.bf16.msra.mxu0 0
  %948 = vmatprep.subr.bf16.mxu0 0
  %949 = vmatpush1.bf16.msra.mxu0 0
  %950 = vmatprep.subr.bf16.mxu0 0
  %951 = vmatpush1.bf16.msra.mxu0 0
  %952 = vmatprep.subr.bf16.mxu0 0
  %953 = vmatpush1.bf16.msra.mxu0 0
  %954 = vmatprep.subr.bf16.mxu0 0
  %955 = vmatpush1.bf16.msra.mxu0 0
  %956 = vmatprep.subr.bf16.mxu0 0
  %957 = vmatpush1.bf16.msra.mxu0 0
  %958 = vmatprep.subr.bf16.mxu0 0
  %959 = vmatpush1.bf16.msra.mxu0 0
  %960 = vmatprep.subr.bf16.mxu0 0
  %961 = vmatpush1.bf16.msra.mxu0 0
  %962 = vmatprep.subr.bf16.mxu0 0
  %963 = vmatpush1.bf16.msra.mxu0 0
  %964 = vmatprep.subr.bf16.mxu0 0
  %965 = vmatpush1.bf16.msra.mxu0 0
  %966 = vmatprep.subr.bf16.mxu0 0
  %967 = vmatpush1.bf16.msra.mxu0 0
  %968 = vmatprep.mubr.bf16.mxu0 0
  %969 = vmatmul.mubr.bf16.gmra.mrb[0].mxu0 %v934
  %v970 = vpop.f32.mrb[0].mxu0
  %v971 = vadd.f32 %v906, %v970
  %v972 = vpop.f32.mrb[0].mxu0
  %v973 = vpop.f32.mrb[0].mxu0
  %v974 = vadd.f32 %v906, %v973
  %v975 = vpop.f32.mrb[0].mxu0
  %976 = vdwg.mxu0
  %v977 = vadd.f32 %v971, %v768
  %v978 = vadd.f32 %v974, %v769
  %v979 = vld [vmem:[%s14] sm:$0x1]
  %v980 = vld [vmem:[%s15] sm:$0x1]
  %v981 = vsel %vm70, %v977, 0.0
  %982 = vadd.xlane.f32.xlu0 %v981
  %v983 = vpop.xlane.xlu0 %982
  %v984 = vsel %vm70, %v978, 0.0
  %985 = vadd.xlane.f32.xlu0 %v984
  %v986 = vpop.xlane.xlu0 %985
  %v987 = vmul.f32 %v983, %v77
  %v988 = vmul.f32 %v986, %v77
  %v989 = vsub.f32 %v977, %v987
  %v990 = vsub.f32 %v978, %v988
  %v991 = vmul.f32 %v989, %v989
  %v992 = vmul.f32 %v990, %v990
  %v993 = vsel %vm70, %v991, 0.0
  %994 = vadd.xlane.f32.xlu0 %v993
  %v995 = vpop.xlane.xlu0 %994
  %v996 = vsel %vm70, %v992, 0.0
  %997 = vadd.xlane.f32.xlu0 %v996
  %v998 = vpop.xlane.xlu0 %997
  %v999 = vmul.f32 %v995, %v77
  %v1000 = vmul.f32 %v998, %v77
  %v1001 = vadd.f32 %v999, 1e-12
  %v1002 = vadd.f32 %v1000, 1e-12
  %v1003 = vrsqrt.pop %v1001
  %v1004 = vrsqrt.pop %v1002
  %v1005 = vmul.f32 %v989, %v1003
  %v1006 = vmul.f32 %v990, %v1004
  %v1008 = vlaneseq
  %v1009 = vshrl.u32 %v1008, 7
  %v1010 = vsub.s32 0, %v1009
  %v1011 = vrot.slane %v979, %v1010
  %v1013 = vmul.f32 %v1005, %v1011
  %v1014 = vmul.f32 %v1006, %v1011
  %v1016 = vlaneseq
  %v1017 = vshrl.u32 %v1016, 7
  %v1018 = vsub.s32 0, %v1017
  %v1019 = vrot.slane %v980, %v1018
  %v1021 = vadd.f32 %v1013, %v1019
  %v1022 = vadd.f32 %v1014, %v1019
  %v1023 = vpack.c.bf16 %v1022, %v1021
  %s1024 = scalar_lea.vmem %s4, 16
  %v1025 = vld [vmem:[%s1024] sm:$0xf]
  %v1026 = vld [vmem:[%s1024 + $0x4] sm:$0xf]
  %v1027 = vld [vmem:[%s1024 + $0x8] sm:$0xf]
  %v1028 = vld [vmem:[%s1024 + $0xc] sm:$0xf]
  %s1029 = scalar_lea.vmem %s5, 1
  %v1030 = vld [vmem:[%s1029] sm:$0x1]
  %v1032 = vlaneseq
  %v1033 = vshrl.u32 %v1032, 7
  %v1034 = vsub.s32 0, %v1033
  %v1035 = vrot.slane %v1030, %v1034
  %v1041 = vunpack.c.l.b16 %v1025
  %v1042 = vunpack.c.l.b16 %v1026
  %v1043 = vunpack.c.l.b16 %v1027
  %v1044 = vunpack.c.l.b16 %v1028
  %v1045 = vpack.c.b16 %v1042, %v1041
  %v1046 = vpack.c.b16 %v1044, %v1043
  %v1050 = vsel %vm70, %v1023, 0
  %1052 = vmatprep.subr.bf16.mxu0 0
  %1053 = vmatpush1.bf16.msra.mxu0 %v1045
  %1054 = vmatprep.subr.bf16.mxu0 0
  %1055 = vmatpush1.bf16.msra.mxu0 %v1046
  %1056 = vmatprep.subr.bf16.mxu0 0
  %1057 = vmatpush1.bf16.msra.mxu0 0
  %1058 = vmatprep.subr.bf16.mxu0 0
  %1059 = vmatpush1.bf16.msra.mxu0 0
  %1060 = vmatprep.subr.bf16.mxu0 0
  %1061 = vmatpush1.bf16.msra.mxu0 0
  %1062 = vmatprep.subr.bf16.mxu0 0
  %1063 = vmatpush1.bf16.msra.mxu0 0
  %1064 = vmatprep.subr.bf16.mxu0 0
  %1065 = vmatpush1.bf16.msra.mxu0 0
  %1066 = vmatprep.subr.bf16.mxu0 0
  %1067 = vmatpush1.bf16.msra.mxu0 0
  %1068 = vmatprep.subr.bf16.mxu0 0
  %1069 = vmatpush1.bf16.msra.mxu0 0
  %1070 = vmatprep.subr.bf16.mxu0 0
  %1071 = vmatpush1.bf16.msra.mxu0 0
  %1072 = vmatprep.subr.bf16.mxu0 0
  %1073 = vmatpush1.bf16.msra.mxu0 0
  %1074 = vmatprep.subr.bf16.mxu0 0
  %1075 = vmatpush1.bf16.msra.mxu0 0
  %1076 = vmatprep.subr.bf16.mxu0 0
  %1077 = vmatpush1.bf16.msra.mxu0 0
  %1078 = vmatprep.subr.bf16.mxu0 0
  %1079 = vmatpush1.bf16.msra.mxu0 0
  %1080 = vmatprep.subr.bf16.mxu0 0
  %1081 = vmatpush1.bf16.msra.mxu0 0
  %1082 = vmatprep.subr.bf16.mxu0 0
  %1083 = vmatpush1.bf16.msra.mxu0 0
  %1084 = vmatprep.mubr.bf16.mxu0 0
  %1085 = vmatmul.mubr.bf16.gmra.mrb[0].mxu0 %v1050
  %v1086 = vpop.f32.mrb[0].mxu0
  %v1087 = vadd.f32 %v1035, %v1086
  %v1088 = vpop.f32.mrb[0].mxu0
  %v1089 = vpop.f32.mrb[0].mxu0
  %v1090 = vadd.f32 %v1035, %v1089
  %v1091 = vpop.f32.mrb[0].mxu0
  %1092 = vdwg.mxu0
  %v1093 = vpack.c.bf16 %v1090, %v1087
  %1095 = vrot.lane.b32.xlu0 %v1093, 96
  %v1096 = vpop.permute.xlu0 %1095
  %v1098 = vsel %vm187, %v1093, 0
  %v1101 = vsel %vm187, %v1096, 0
  %1103 = vmatprep.subr.bf16.mxu0 0
  %1104 = vmatpush1.bf16.xpose.msra.mxu0 %v1101
  %1105 = vmatprep.subr.bf16.mxu0 0
  %1106 = vmatpush1.bf16.xpose.msra.mxu0 0
  %1107 = vmatprep.subr.bf16.mxu0 0
  %1108 = vmatpush1.bf16.xpose.msra.mxu0 0
  %1109 = vmatprep.subr.bf16.mxu0 0
  %1110 = vmatpush1.bf16.xpose.msra.mxu0 0
  %1111 = vmatprep.subr.bf16.mxu0 0
  %1112 = vmatpush1.bf16.xpose.msra.mxu0 0
  %1113 = vmatprep.subr.bf16.mxu0 0
  %1114 = vmatpush1.bf16.xpose.msra.mxu0 0
  %1115 = vmatprep.subr.bf16.mxu0 0
  %1116 = vmatpush1.bf16.xpose.msra.mxu0 0
  %1117 = vmatprep.subr.bf16.mxu0 0
  %1118 = vmatpush1.bf16.xpose.msra.mxu0 0
  %1119 = vmatprep.subr.bf16.mxu0 0
  %1120 = vmatpush1.bf16.xpose.msra.mxu0 0
  %1121 = vmatprep.subr.bf16.mxu0 0
  %1122 = vmatpush1.bf16.xpose.msra.mxu0 0
  %1123 = vmatprep.subr.bf16.mxu0 0
  %1124 = vmatpush1.bf16.xpose.msra.mxu0 0
  %1125 = vmatprep.subr.bf16.mxu0 0
  %1126 = vmatpush1.bf16.xpose.msra.mxu0 0
  %1127 = vmatprep.subr.bf16.mxu0 0
  %1128 = vmatpush1.bf16.xpose.msra.mxu0 0
  %1129 = vmatprep.subr.bf16.mxu0 0
  %1130 = vmatpush1.bf16.xpose.msra.mxu0 0
  %1131 = vmatprep.subr.bf16.mxu0 0
  %1132 = vmatpush1.bf16.xpose.msra.mxu0 0
  %1133 = vmatprep.subr.bf16.mxu0 0
  %1134 = vmatpush1.bf16.xpose.msra.mxu0 0
  %1135 = vmatprep.mubr.bf16.mxu0 0
  %1136 = vmatmul.mubr.bf16.gmra.mrb[0].mxu0 %v1098
  %v1137 = vpop.f32.mrb[0].mxu0
  %v1138 = vadd.f32 0.0, %v1137
  %v1139 = vpop.f32.mrb[0].mxu0
  %v1140 = vpop.f32.mrb[0].mxu0
  %v1141 = vpop.f32.mrb[0].mxu0
  %1142 = vdwg.mxu0
  %v1143 = vmul.f32 %v1138, 0.25
  %v1144 = vadd.f32 %v1143, %v238
  %v1145 = vsel %vm240, %v1144, -inf
  %1146 = vmax.xlane.f32.xlu0 %v1145
  %v1147 = vpop.xlane.xlu0 %1146
  %v1148 = vsub.f32 %v1144, %v1147
  %v1149 = vmul.f32 %v1148, 1.442695
  %v1150 = vpow.pop %v1149
  %v1151 = vsel %vm240, %v1150, 0.0
  %1152 = vadd.xlane.f32.xlu0 %v1151
  %v1153 = vpop.xlane.xlu0 %1152
  %v1154 = vrcp.pop %v1153
  %v1155 = vmul.f32 %v1150, %v1154
  %v1156 = vpack.c.bf16 %v1155, %v1155
  %1157 = vrot.lane.b32.xlu0 %v1093, 64
  %v1158 = vpop.permute.xlu0 %1157
  %v1160 = vsel %vm240, %v1156, 0
  %v1163 = vsel %vm258, %v1158, 0
  %1165 = vmatprep.subr.bf16.mxu0 0
  %1166 = vmatpush1.bf16.msra.mxu0 %v1163
  %1167 = vmatprep.subr.bf16.mxu0 0
  %1168 = vmatpush1.bf16.msra.mxu0 0
  %1169 = vmatprep.subr.bf16.mxu0 0
  %1170 = vmatpush1.bf16.msra.mxu0 0
  %1171 = vmatprep.subr.bf16.mxu0 0
  %1172 = vmatpush1.bf16.msra.mxu0 0
  %1173 = vmatprep.subr.bf16.mxu0 0
  %1174 = vmatpush1.bf16.msra.mxu0 0
  %1175 = vmatprep.subr.bf16.mxu0 0
  %1176 = vmatpush1.bf16.msra.mxu0 0
  %1177 = vmatprep.subr.bf16.mxu0 0
  %1178 = vmatpush1.bf16.msra.mxu0 0
  %1179 = vmatprep.subr.bf16.mxu0 0
  %1180 = vmatpush1.bf16.msra.mxu0 0
  %1181 = vmatprep.subr.bf16.mxu0 0
  %1182 = vmatpush1.bf16.msra.mxu0 0
  %1183 = vmatprep.subr.bf16.mxu0 0
  %1184 = vmatpush1.bf16.msra.mxu0 0
  %1185 = vmatprep.subr.bf16.mxu0 0
  %1186 = vmatpush1.bf16.msra.mxu0 0
  %1187 = vmatprep.subr.bf16.mxu0 0
  %1188 = vmatpush1.bf16.msra.mxu0 0
  %1189 = vmatprep.subr.bf16.mxu0 0
  %1190 = vmatpush1.bf16.msra.mxu0 0
  %1191 = vmatprep.subr.bf16.mxu0 0
  %1192 = vmatpush1.bf16.msra.mxu0 0
  %1193 = vmatprep.subr.bf16.mxu0 0
  %1194 = vmatpush1.bf16.msra.mxu0 0
  %1195 = vmatprep.subr.bf16.mxu0 0
  %1196 = vmatpush1.bf16.msra.mxu0 0
  %1197 = vmatprep.mubr.bf16.mxu0 0
  %1198 = vmatmul.mubr.bf16.gmra.mrb[0].mxu0 %v1160
  %v1199 = vpop.f32.mrb[0].mxu0
  %v1200 = vadd.f32 0.0, %v1199
  %v1201 = vpop.f32.mrb[0].mxu0
  %v1202 = vpop.f32.mrb[0].mxu0
  %v1203 = vpop.f32.mrb[0].mxu0
  %1204 = vdwg.mxu0
  %1205 = vst.msk [vmem:[#allocation2] sm:$0xff] %vm187, %v1200
  %1206 = vrot.lane.b32.xlu0 %v1093, 112
  %v1207 = vpop.permute.xlu0 %1206
  %1208 = vrot.lane.b32.xlu0 %v1093, 80
  %v1209 = vpop.permute.xlu0 %1208
  %v1211 = vsel %vm187, %v1207, 0
  %v1214 = vsel %vm187, %v1209, 0
  %1216 = vmatprep.subr.bf16.mxu0 0
  %1217 = vmatpush1.bf16.xpose.msra.mxu0 %v1214
  %1218 = vmatprep.subr.bf16.mxu0 0
  %1219 = vmatpush1.bf16.xpose.msra.mxu0 0
  %1220 = vmatprep.subr.bf16.mxu0 0
  %1221 = vmatpush1.bf16.xpose.msra.mxu0 0
  %1222 = vmatprep.subr.bf16.mxu0 0
  %1223 = vmatpush1.bf16.xpose.msra.mxu0 0
  %1224 = vmatprep.subr.bf16.mxu0 0
  %1225 = vmatpush1.bf16.xpose.msra.mxu0 0
  %1226 = vmatprep.subr.bf16.mxu0 0
  %1227 = vmatpush1.bf16.xpose.msra.mxu0 0
  %1228 = vmatprep.subr.bf16.mxu0 0
  %1229 = vmatpush1.bf16.xpose.msra.mxu0 0
  %1230 = vmatprep.subr.bf16.mxu0 0
  %1231 = vmatpush1.bf16.xpose.msra.mxu0 0
  %1232 = vmatprep.subr.bf16.mxu0 0
  %1233 = vmatpush1.bf16.xpose.msra.mxu0 0
  %1234 = vmatprep.subr.bf16.mxu0 0
  %1235 = vmatpush1.bf16.xpose.msra.mxu0 0
  %1236 = vmatprep.subr.bf16.mxu0 0
  %1237 = vmatpush1.bf16.xpose.msra.mxu0 0
  %1238 = vmatprep.subr.bf16.mxu0 0
  %1239 = vmatpush1.bf16.xpose.msra.mxu0 0
  %1240 = vmatprep.subr.bf16.mxu0 0
  %1241 = vmatpush1.bf16.xpose.msra.mxu0 0
  %1242 = vmatprep.subr.bf16.mxu0 0
  %1243 = vmatpush1.bf16.xpose.msra.mxu0 0
  %1244 = vmatprep.subr.bf16.mxu0 0
  %1245 = vmatpush1.bf16.xpose.msra.mxu0 0
  %1246 = vmatprep.subr.bf16.mxu0 0
  %1247 = vmatpush1.bf16.xpose.msra.mxu0 0
  %1248 = vmatprep.mubr.bf16.mxu0 0
  %1249 = vmatmul.mubr.bf16.gmra.mrb[0].mxu0 %v1211
  %v1250 = vpop.f32.mrb[0].mxu0
  %v1251 = vadd.f32 0.0, %v1250
  %v1252 = vpop.f32.mrb[0].mxu0
  %v1253 = vpop.f32.mrb[0].mxu0
  %v1254 = vpop.f32.mrb[0].mxu0
  %1255 = vdwg.mxu0
  %v1256 = vmul.f32 %v1251, 0.25
  %v1257 = vadd.f32 %v1256, %v238
  %v1258 = vsel %vm240, %v1257, -inf
  %1259 = vmax.xlane.f32.xlu0 %v1258
  %v1260 = vpop.xlane.xlu0 %1259
  %v1261 = vsub.f32 %v1257, %v1260
  %v1262 = vmul.f32 %v1261, 1.442695
  %v1263 = vpow.pop %v1262
  %v1264 = vsel %vm240, %v1263, 0.0
  %1265 = vadd.xlane.f32.xlu0 %v1264
  %v1266 = vpop.xlane.xlu0 %1265
  %v1267 = vrcp.pop %v1266
  %v1268 = vmul.f32 %v1263, %v1267
  %v1269 = vpack.c.bf16 %v1268, %v1268
  %1270 = vrot.lane.b32.xlu0 %v1093, 48
  %v1271 = vpop.permute.xlu0 %1270
  %v1273 = vsel %vm240, %v1269, 0
  %v1276 = vsel %vm258, %v1271, 0
  %1278 = vmatprep.subr.bf16.mxu0 0
  %1279 = vmatpush1.bf16.msra.mxu0 %v1276
  %1280 = vmatprep.subr.bf16.mxu0 0
  %1281 = vmatpush1.bf16.msra.mxu0 0
  %1282 = vmatprep.subr.bf16.mxu0 0
  %1283 = vmatpush1.bf16.msra.mxu0 0
  %1284 = vmatprep.subr.bf16.mxu0 0
  %1285 = vmatpush1.bf16.msra.mxu0 0
  %1286 = vmatprep.subr.bf16.mxu0 0
  %1287 = vmatpush1.bf16.msra.mxu0 0
  %1288 = vmatprep.subr.bf16.mxu0 0
  %1289 = vmatpush1.bf16.msra.mxu0 0
  %1290 = vmatprep.subr.bf16.mxu0 0
  %1291 = vmatpush1.bf16.msra.mxu0 0
  %1292 = vmatprep.subr.bf16.mxu0 0
  %1293 = vmatpush1.bf16.msra.mxu0 0
  %1294 = vmatprep.subr.bf16.mxu0 0
  %1295 = vmatpush1.bf16.msra.mxu0 0
  %1296 = vmatprep.subr.bf16.mxu0 0
  %1297 = vmatpush1.bf16.msra.mxu0 0
  %1298 = vmatprep.subr.bf16.mxu0 0
  %1299 = vmatpush1.bf16.msra.mxu0 0
  %1300 = vmatprep.subr.bf16.mxu0 0
  %1301 = vmatpush1.bf16.msra.mxu0 0
  %1302 = vmatprep.subr.bf16.mxu0 0
  %1303 = vmatpush1.bf16.msra.mxu0 0
  %1304 = vmatprep.subr.bf16.mxu0 0
  %1305 = vmatpush1.bf16.msra.mxu0 0
  %1306 = vmatprep.subr.bf16.mxu0 0
  %1307 = vmatpush1.bf16.msra.mxu0 0
  %1308 = vmatprep.subr.bf16.mxu0 0
  %1309 = vmatpush1.bf16.msra.mxu0 0
  %1310 = vmatprep.mubr.bf16.mxu0 0
  %1311 = vmatmul.mubr.bf16.gmra.mrb[0].mxu0 %v1273
  %v1312 = vpop.f32.mrb[0].mxu0
  %v1313 = vadd.f32 0.0, %v1312
  %v1314 = vpop.f32.mrb[0].mxu0
  %v1315 = vpop.f32.mrb[0].mxu0
  %v1316 = vpop.f32.mrb[0].mxu0
  %1317 = vdwg.mxu0
  %1319 = vrot.lane.b32.xlu0 %v1313, 16
  %v1320 = vpop.permute.xlu0 %1319
  %1322 = vst.msk [vmem:[#allocation2] sm:$0xff] %vm419, %v1320
  %v1323 = vrot.slane %v1093, 4
  %1324 = vrot.lane.b32.xlu0 %v1323, 96
  %v1325 = vpop.permute.xlu0 %1324
  %v1327 = vsel %vm187, %v1323, 0
  %v1330 = vsel %vm187, %v1325, 0
  %1332 = vmatprep.subr.bf16.mxu0 0
  %1333 = vmatpush1.bf16.xpose.msra.mxu0 %v1330
  %1334 = vmatprep.subr.bf16.mxu0 0
  %1335 = vmatpush1.bf16.xpose.msra.mxu0 0
  %1336 = vmatprep.subr.bf16.mxu0 0
  %1337 = vmatpush1.bf16.xpose.msra.mxu0 0
  %1338 = vmatprep.subr.bf16.mxu0 0
  %1339 = vmatpush1.bf16.xpose.msra.mxu0 0
  %1340 = vmatprep.subr.bf16.mxu0 0
  %1341 = vmatpush1.bf16.xpose.msra.mxu0 0
  %1342 = vmatprep.subr.bf16.mxu0 0
  %1343 = vmatpush1.bf16.xpose.msra.mxu0 0
  %1344 = vmatprep.subr.bf16.mxu0 0
  %1345 = vmatpush1.bf16.xpose.msra.mxu0 0
  %1346 = vmatprep.subr.bf16.mxu0 0
  %1347 = vmatpush1.bf16.xpose.msra.mxu0 0
  %1348 = vmatprep.subr.bf16.mxu0 0
  %1349 = vmatpush1.bf16.xpose.msra.mxu0 0
  %1350 = vmatprep.subr.bf16.mxu0 0
  %1351 = vmatpush1.bf16.xpose.msra.mxu0 0
  %1352 = vmatprep.subr.bf16.mxu0 0
  %1353 = vmatpush1.bf16.xpose.msra.mxu0 0
  %1354 = vmatprep.subr.bf16.mxu0 0
  %1355 = vmatpush1.bf16.xpose.msra.mxu0 0
  %1356 = vmatprep.subr.bf16.mxu0 0
  %1357 = vmatpush1.bf16.xpose.msra.mxu0 0
  %1358 = vmatprep.subr.bf16.mxu0 0
  %1359 = vmatpush1.bf16.xpose.msra.mxu0 0
  %1360 = vmatprep.subr.bf16.mxu0 0
  %1361 = vmatpush1.bf16.xpose.msra.mxu0 0
  %1362 = vmatprep.subr.bf16.mxu0 0
  %1363 = vmatpush1.bf16.xpose.msra.mxu0 0
  %1364 = vmatprep.mubr.bf16.mxu0 0
  %1365 = vmatmul.mubr.bf16.gmra.mrb[0].mxu0 %v1327
  %v1366 = vpop.f32.mrb[0].mxu0
  %v1367 = vadd.f32 0.0, %v1366
  %v1368 = vpop.f32.mrb[0].mxu0
  %v1369 = vpop.f32.mrb[0].mxu0
  %v1370 = vpop.f32.mrb[0].mxu0
  %1371 = vdwg.mxu0
  %v1372 = vmul.f32 %v1367, 0.25
  %v1373 = vadd.f32 %v1372, %v474
  %v1374 = vsel %vm240, %v1373, -inf
  %1375 = vmax.xlane.f32.xlu0 %v1374
  %v1376 = vpop.xlane.xlu0 %1375
  %v1377 = vsub.f32 %v1373, %v1376
  %v1378 = vmul.f32 %v1377, 1.442695
  %v1379 = vpow.pop %v1378
  %v1380 = vsel %vm240, %v1379, 0.0
  %1381 = vadd.xlane.f32.xlu0 %v1380
  %v1382 = vpop.xlane.xlu0 %1381
  %v1383 = vrcp.pop %v1382
  %v1384 = vmul.f32 %v1379, %v1383
  %v1385 = vpack.c.bf16 %v1384, %v1384
  %1386 = vrot.lane.b32.xlu0 %v1323, 64
  %v1387 = vpop.permute.xlu0 %1386
  %v1389 = vsel %vm240, %v1385, 0
  %v1392 = vsel %vm258, %v1387, 0
  %1394 = vmatprep.subr.bf16.mxu0 0
  %1395 = vmatpush1.bf16.msra.mxu0 %v1392
  %1396 = vmatprep.subr.bf16.mxu0 0
  %1397 = vmatpush1.bf16.msra.mxu0 0
  %1398 = vmatprep.subr.bf16.mxu0 0
  %1399 = vmatpush1.bf16.msra.mxu0 0
  %1400 = vmatprep.subr.bf16.mxu0 0
  %1401 = vmatpush1.bf16.msra.mxu0 0
  %1402 = vmatprep.subr.bf16.mxu0 0
  %1403 = vmatpush1.bf16.msra.mxu0 0
  %1404 = vmatprep.subr.bf16.mxu0 0
  %1405 = vmatpush1.bf16.msra.mxu0 0
  %1406 = vmatprep.subr.bf16.mxu0 0
  %1407 = vmatpush1.bf16.msra.mxu0 0
  %1408 = vmatprep.subr.bf16.mxu0 0
  %1409 = vmatpush1.bf16.msra.mxu0 0
  %1410 = vmatprep.subr.bf16.mxu0 0
  %1411 = vmatpush1.bf16.msra.mxu0 0
  %1412 = vmatprep.subr.bf16.mxu0 0
  %1413 = vmatpush1.bf16.msra.mxu0 0
  %1414 = vmatprep.subr.bf16.mxu0 0
  %1415 = vmatpush1.bf16.msra.mxu0 0
  %1416 = vmatprep.subr.bf16.mxu0 0
  %1417 = vmatpush1.bf16.msra.mxu0 0
  %1418 = vmatprep.subr.bf16.mxu0 0
  %1419 = vmatpush1.bf16.msra.mxu0 0
  %1420 = vmatprep.subr.bf16.mxu0 0
  %1421 = vmatpush1.bf16.msra.mxu0 0
  %1422 = vmatprep.subr.bf16.mxu0 0
  %1423 = vmatpush1.bf16.msra.mxu0 0
  %1424 = vmatprep.subr.bf16.mxu0 0
  %1425 = vmatpush1.bf16.msra.mxu0 0
  %1426 = vmatprep.mubr.bf16.mxu0 0
  %1427 = vmatmul.mubr.bf16.gmra.mrb[0].mxu0 %v1389
  %v1428 = vpop.f32.mrb[0].mxu0
  %v1429 = vadd.f32 0.0, %v1428
  %v1430 = vpop.f32.mrb[0].mxu0
  %v1431 = vpop.f32.mrb[0].mxu0
  %v1432 = vpop.f32.mrb[0].mxu0
  %1433 = vdwg.mxu0
  %1434 = vst.msk [vmem:[#allocation2 + $0x8] sm:$0xff] %vm187, %v1429
  %1435 = vrot.lane.b32.xlu0 %v1323, 112
  %v1436 = vpop.permute.xlu0 %1435
  %1437 = vrot.lane.b32.xlu0 %v1323, 80
  %v1438 = vpop.permute.xlu0 %1437
  %v1440 = vsel %vm187, %v1436, 0
  %v1443 = vsel %vm187, %v1438, 0
  %1445 = vmatprep.subr.bf16.mxu0 0
  %1446 = vmatpush1.bf16.xpose.msra.mxu0 %v1443
  %1447 = vmatprep.subr.bf16.mxu0 0
  %1448 = vmatpush1.bf16.xpose.msra.mxu0 0
  %1449 = vmatprep.subr.bf16.mxu0 0
  %1450 = vmatpush1.bf16.xpose.msra.mxu0 0
  %1451 = vmatprep.subr.bf16.mxu0 0
  %1452 = vmatpush1.bf16.xpose.msra.mxu0 0
  %1453 = vmatprep.subr.bf16.mxu0 0
  %1454 = vmatpush1.bf16.xpose.msra.mxu0 0
  %1455 = vmatprep.subr.bf16.mxu0 0
  %1456 = vmatpush1.bf16.xpose.msra.mxu0 0
  %1457 = vmatprep.subr.bf16.mxu0 0
  %1458 = vmatpush1.bf16.xpose.msra.mxu0 0
  %1459 = vmatprep.subr.bf16.mxu0 0
  %1460 = vmatpush1.bf16.xpose.msra.mxu0 0
  %1461 = vmatprep.subr.bf16.mxu0 0
  %1462 = vmatpush1.bf16.xpose.msra.mxu0 0
  %1463 = vmatprep.subr.bf16.mxu0 0
  %1464 = vmatpush1.bf16.xpose.msra.mxu0 0
  %1465 = vmatprep.subr.bf16.mxu0 0
  %1466 = vmatpush1.bf16.xpose.msra.mxu0 0
  %1467 = vmatprep.subr.bf16.mxu0 0
  %1468 = vmatpush1.bf16.xpose.msra.mxu0 0
  %1469 = vmatprep.subr.bf16.mxu0 0
  %1470 = vmatpush1.bf16.xpose.msra.mxu0 0
  %1471 = vmatprep.subr.bf16.mxu0 0
  %1472 = vmatpush1.bf16.xpose.msra.mxu0 0
  %1473 = vmatprep.subr.bf16.mxu0 0
  %1474 = vmatpush1.bf16.xpose.msra.mxu0 0
  %1475 = vmatprep.subr.bf16.mxu0 0
  %1476 = vmatpush1.bf16.xpose.msra.mxu0 0
  %1477 = vmatprep.mubr.bf16.mxu0 0
  %1478 = vmatmul.mubr.bf16.gmra.mrb[0].mxu0 %v1440
  %v1479 = vpop.f32.mrb[0].mxu0
  %v1480 = vadd.f32 0.0, %v1479
  %v1481 = vpop.f32.mrb[0].mxu0
  %v1482 = vpop.f32.mrb[0].mxu0
  %v1483 = vpop.f32.mrb[0].mxu0
  %1484 = vdwg.mxu0
  %v1485 = vmul.f32 %v1480, 0.25
  %v1486 = vadd.f32 %v1485, %v474
  %v1487 = vsel %vm240, %v1486, -inf
  %1488 = vmax.xlane.f32.xlu0 %v1487
  %v1489 = vpop.xlane.xlu0 %1488
  %v1490 = vsub.f32 %v1486, %v1489
  %v1491 = vmul.f32 %v1490, 1.442695
  %v1492 = vpow.pop %v1491
  %v1493 = vsel %vm240, %v1492, 0.0
  %1494 = vadd.xlane.f32.xlu0 %v1493
  %v1495 = vpop.xlane.xlu0 %1494
  %v1496 = vrcp.pop %v1495
  %v1497 = vmul.f32 %v1492, %v1496
  %v1498 = vpack.c.bf16 %v1497, %v1497
  %1499 = vrot.lane.b32.xlu0 %v1323, 48
  %v1500 = vpop.permute.xlu0 %1499
  %v1502 = vsel %vm240, %v1498, 0
  %v1505 = vsel %vm258, %v1500, 0
  %1507 = vmatprep.subr.bf16.mxu0 0
  %1508 = vmatpush1.bf16.msra.mxu0 %v1505
  %1509 = vmatprep.subr.bf16.mxu0 0
  %1510 = vmatpush1.bf16.msra.mxu0 0
  %1511 = vmatprep.subr.bf16.mxu0 0
  %1512 = vmatpush1.bf16.msra.mxu0 0
  %1513 = vmatprep.subr.bf16.mxu0 0
  %1514 = vmatpush1.bf16.msra.mxu0 0
  %1515 = vmatprep.subr.bf16.mxu0 0
  %1516 = vmatpush1.bf16.msra.mxu0 0
  %1517 = vmatprep.subr.bf16.mxu0 0
  %1518 = vmatpush1.bf16.msra.mxu0 0
  %1519 = vmatprep.subr.bf16.mxu0 0
  %1520 = vmatpush1.bf16.msra.mxu0 0
  %1521 = vmatprep.subr.bf16.mxu0 0
  %1522 = vmatpush1.bf16.msra.mxu0 0
  %1523 = vmatprep.subr.bf16.mxu0 0
  %1524 = vmatpush1.bf16.msra.mxu0 0
  %1525 = vmatprep.subr.bf16.mxu0 0
  %1526 = vmatpush1.bf16.msra.mxu0 0
  %1527 = vmatprep.subr.bf16.mxu0 0
  %1528 = vmatpush1.bf16.msra.mxu0 0
  %1529 = vmatprep.subr.bf16.mxu0 0
  %1530 = vmatpush1.bf16.msra.mxu0 0
  %1531 = vmatprep.subr.bf16.mxu0 0
  %1532 = vmatpush1.bf16.msra.mxu0 0
  %1533 = vmatprep.subr.bf16.mxu0 0
  %1534 = vmatpush1.bf16.msra.mxu0 0
  %1535 = vmatprep.subr.bf16.mxu0 0
  %1536 = vmatpush1.bf16.msra.mxu0 0
  %1537 = vmatprep.subr.bf16.mxu0 0
  %1538 = vmatpush1.bf16.msra.mxu0 0
  %1539 = vmatprep.mubr.bf16.mxu0 0
  %1540 = vmatmul.mubr.bf16.gmra.mrb[0].mxu0 %v1502
  %v1541 = vpop.f32.mrb[0].mxu0
  %v1542 = vadd.f32 0.0, %v1541
  %v1543 = vpop.f32.mrb[0].mxu0
  %v1544 = vpop.f32.mrb[0].mxu0
  %v1545 = vpop.f32.mrb[0].mxu0
  %1546 = vdwg.mxu0
  %1548 = vrot.lane.b32.xlu0 %v1542, 16
  %v1549 = vpop.permute.xlu0 %1548
  %1551 = vst.msk [vmem:[#allocation2 + $0x8] sm:$0xff] %vm419, %v1549
  %v1552 = vld [vmem:[#allocation2] sm:$0xff]
  %v1553 = vld [vmem:[#allocation2 + $0x8] sm:$0xff]
  %v1554 = vpack.c.bf16 %v1553, %v1552
  %s1555 = scalar_lea.vmem %s6, 16
  %v1556 = vld [vmem:[%s1555] sm:$0xf]
  %v1557 = vld [vmem:[%s1555 + $0x4] sm:$0xf]
  %v1558 = vld [vmem:[%s1555 + $0x8] sm:$0xf]
  %v1559 = vld [vmem:[%s1555 + $0xc] sm:$0xf]
  %s1560 = scalar_lea.vmem %s7, 1
  %v1561 = vld [vmem:[%s1560] sm:$0x1]
  %v1563 = vlaneseq
  %v1564 = vshrl.u32 %v1563, 7
  %v1565 = vsub.s32 0, %v1564
  %v1566 = vrot.slane %v1561, %v1565
  %v1572 = vunpack.c.l.b16 %v1556
  %v1573 = vunpack.c.l.b16 %v1557
  %v1574 = vunpack.c.l.b16 %v1558
  %v1575 = vunpack.c.l.b16 %v1559
  %v1576 = vpack.c.b16 %v1573, %v1572
  %v1577 = vpack.c.b16 %v1575, %v1574
  %v1581 = vsel %vm70, %v1554, 0
  %1583 = vmatprep.subr.bf16.mxu0 0
  %1584 = vmatpush1.bf16.msra.mxu0 %v1576
  %1585 = vmatprep.subr.bf16.mxu0 0
  %1586 = vmatpush1.bf16.msra.mxu0 %v1577
  %1587 = vmatprep.subr.bf16.mxu0 0
  %1588 = vmatpush1.bf16.msra.mxu0 0
  %1589 = vmatprep.subr.bf16.mxu0 0
  %1590 = vmatpush1.bf16.msra.mxu0 0
  %1591 = vmatprep.subr.bf16.mxu0 0
  %1592 = vmatpush1.bf16.msra.mxu0 0
  %1593 = vmatprep.subr.bf16.mxu0 0
  %1594 = vmatpush1.bf16.msra.mxu0 0
  %1595 = vmatprep.subr.bf16.mxu0 0
  %1596 = vmatpush1.bf16.msra.mxu0 0
  %1597 = vmatprep.subr.bf16.mxu0 0
  %1598 = vmatpush1.bf16.msra.mxu0 0
  %1599 = vmatprep.subr.bf16.mxu0 0
  %1600 = vmatpush1.bf16.msra.mxu0 0
  %1601 = vmatprep.subr.bf16.mxu0 0
  %1602 = vmatpush1.bf16.msra.mxu0 0
  %1603 = vmatprep.subr.bf16.mxu0 0
  %1604 = vmatpush1.bf16.msra.mxu0 0
  %1605 = vmatprep.subr.bf16.mxu0 0
  %1606 = vmatpush1.bf16.msra.mxu0 0
  %1607 = vmatprep.subr.bf16.mxu0 0
  %1608 = vmatpush1.bf16.msra.mxu0 0
  %1609 = vmatprep.subr.bf16.mxu0 0
  %1610 = vmatpush1.bf16.msra.mxu0 0
  %1611 = vmatprep.subr.bf16.mxu0 0
  %1612 = vmatpush1.bf16.msra.mxu0 0
  %1613 = vmatprep.subr.bf16.mxu0 0
  %1614 = vmatpush1.bf16.msra.mxu0 0
  %1615 = vmatprep.mubr.bf16.mxu0 0
  %1616 = vmatmul.mubr.bf16.gmra.mrb[0].mxu0 %v1581
  %v1617 = vpop.f32.mrb[0].mxu0
  %v1618 = vadd.f32 %v1566, %v1617
  %v1619 = vpop.f32.mrb[0].mxu0
  %v1620 = vpop.f32.mrb[0].mxu0
  %v1621 = vadd.f32 %v1566, %v1620
  %v1622 = vpop.f32.mrb[0].mxu0
  %1623 = vdwg.mxu0
  %v1624 = vadd.f32 %v1618, %v1021
  %v1625 = vadd.f32 %v1621, %v1022
  %s1626 = scalar_lea.vmem %s8, 1
  %v1627 = vld [vmem:[%s1626] sm:$0x1]
  %s1628 = scalar_lea.vmem %s9, 1
  %v1629 = vld [vmem:[%s1628] sm:$0x1]
  %v1630 = vsel %vm70, %v1624, 0.0
  %1631 = vadd.xlane.f32.xlu0 %v1630
  %v1632 = vpop.xlane.xlu0 %1631
  %v1633 = vsel %vm70, %v1625, 0.0
  %1634 = vadd.xlane.f32.xlu0 %v1633
  %v1635 = vpop.xlane.xlu0 %1634
  %v1636 = vmul.f32 %v1632, %v77
  %v1637 = vmul.f32 %v1635, %v77
  %v1638 = vsub.f32 %v1624, %v1636
  %v1639 = vsub.f32 %v1625, %v1637
  %v1640 = vmul.f32 %v1638, %v1638
  %v1641 = vmul.f32 %v1639, %v1639
  %v1642 = vsel %vm70, %v1640, 0.0
  %1643 = vadd.xlane.f32.xlu0 %v1642
  %v1644 = vpop.xlane.xlu0 %1643
  %v1645 = vsel %vm70, %v1641, 0.0
  %1646 = vadd.xlane.f32.xlu0 %v1645
  %v1647 = vpop.xlane.xlu0 %1646
  %v1648 = vmul.f32 %v1644, %v77
  %v1649 = vmul.f32 %v1647, %v77
  %v1650 = vadd.f32 %v1648, 1e-12
  %v1651 = vadd.f32 %v1649, 1e-12
  %v1652 = vrsqrt.pop %v1650
  %v1653 = vrsqrt.pop %v1651
  %v1654 = vmul.f32 %v1638, %v1652
  %v1655 = vmul.f32 %v1639, %v1653
  %v1657 = vlaneseq
  %v1658 = vshrl.u32 %v1657, 7
  %v1659 = vsub.s32 0, %v1658
  %v1660 = vrot.slane %v1627, %v1659
  %v1662 = vmul.f32 %v1654, %v1660
  %v1663 = vmul.f32 %v1655, %v1660
  %v1665 = vlaneseq
  %v1666 = vshrl.u32 %v1665, 7
  %v1667 = vsub.s32 0, %v1666
  %v1668 = vrot.slane %v1629, %v1667
  %v1670 = vadd.f32 %v1662, %v1668
  %v1671 = vadd.f32 %v1663, %v1668
  %v1672 = vpack.c.bf16 %v1671, %v1670
  %s1673 = scalar_lea.vmem %s10, 16
  %v1674 = vld [vmem:[%s1673] sm:$0xf]
  %v1675 = vld [vmem:[%s1673 + $0x4] sm:$0xf]
  %v1676 = vld [vmem:[%s1673 + $0x8] sm:$0xf]
  %v1677 = vld [vmem:[%s1673 + $0xc] sm:$0xf]
  %s1678 = scalar_lea.vmem %s11, 1
  %v1679 = vld [vmem:[%s1678] sm:$0x1]
  %v1681 = vlaneseq
  %v1682 = vshrl.u32 %v1681, 7
  %v1683 = vsub.s32 0, %v1682
  %v1684 = vrot.slane %v1679, %v1683
  %v1690 = vunpack.c.l.b16 %v1674
  %v1691 = vunpack.c.l.b16 %v1675
  %v1692 = vunpack.c.l.b16 %v1676
  %v1693 = vunpack.c.l.b16 %v1677
  %v1694 = vpack.c.b16 %v1691, %v1690
  %v1695 = vpack.c.b16 %v1693, %v1692
  %v1699 = vsel %vm70, %v1672, 0
  %1701 = vmatprep.subr.bf16.mxu0 0
  %1702 = vmatpush1.bf16.msra.mxu0 %v1694
  %1703 = vmatprep.subr.bf16.mxu0 0
  %1704 = vmatpush1.bf16.msra.mxu0 %v1695
  %1705 = vmatprep.subr.bf16.mxu0 0
  %1706 = vmatpush1.bf16.msra.mxu0 0
  %1707 = vmatprep.subr.bf16.mxu0 0
  %1708 = vmatpush1.bf16.msra.mxu0 0
  %1709 = vmatprep.subr.bf16.mxu0 0
  %1710 = vmatpush1.bf16.msra.mxu0 0
  %1711 = vmatprep.subr.bf16.mxu0 0
  %1712 = vmatpush1.bf16.msra.mxu0 0
  %1713 = vmatprep.subr.bf16.mxu0 0
  %1714 = vmatpush1.bf16.msra.mxu0 0
  %1715 = vmatprep.subr.bf16.mxu0 0
  %1716 = vmatpush1.bf16.msra.mxu0 0
  %1717 = vmatprep.subr.bf16.mxu0 0
  %1718 = vmatpush1.bf16.msra.mxu0 0
  %1719 = vmatprep.subr.bf16.mxu0 0
  %1720 = vmatpush1.bf16.msra.mxu0 0
  %1721 = vmatprep.subr.bf16.mxu0 0
  %1722 = vmatpush1.bf16.msra.mxu0 0
  %1723 = vmatprep.subr.bf16.mxu0 0
  %1724 = vmatpush1.bf16.msra.mxu0 0
  %1725 = vmatprep.subr.bf16.mxu0 0
  %1726 = vmatpush1.bf16.msra.mxu0 0
  %1727 = vmatprep.subr.bf16.mxu0 0
  %1728 = vmatpush1.bf16.msra.mxu0 0
  %1729 = vmatprep.subr.bf16.mxu0 0
  %1730 = vmatpush1.bf16.msra.mxu0 0
  %1731 = vmatprep.subr.bf16.mxu0 0
  %1732 = vmatpush1.bf16.msra.mxu0 0
  %1733 = vmatprep.mubr.bf16.mxu0 0
  %1734 = vmatmul.mubr.bf16.gmra.mrb[0].mxu0 %v1699
  %v1735 = vpop.f32.mrb[0].mxu0
  %v1736 = vadd.f32 %v1684, %v1735
  %v1737 = vpop.f32.mrb[0].mxu0
  %v1738 = vpop.f32.mrb[0].mxu0
  %v1739 = vadd.f32 %v1684, %v1738
  %v1740 = vpop.f32.mrb[0].mxu0
  %1741 = vdwg.mxu0
  %v1742 = vmul.f32 %v1736, 0.5
  %v1743 = vmul.f32 %v1739, 0.5
  %v1744 = vmul.f32 %v1736, 0.70710677
  %v1745 = vmul.f32 %v1739, 0.70710677
  %v1746 = vand.u32 2147483647, %v1744
  %v1747 = vand.u32 2147483647, %v1745
  %v1748 = vmul.f32 %v1746, 0.3275911
  %v1749 = vmul.f32 %v1747, 0.3275911
  %v1750 = vadd.f32 %v1748, 1.0
  %v1751 = vadd.f32 %v1749, 1.0
  %v1752 = vrcp.pop %v1750
  %v1753 = vmul.f32 1.0, %v1752
  %v1754 = vrcp.pop %v1751
  %v1755 = vmul.f32 1.0, %v1754
  %v1756 = vmul.f32 %v1753, 1.0614054
  %v1757 = vmul.f32 %v1755, 1.0614054
  %v1758 = vadd.f32 %v1756, -1.4531521
  %v1759 = vadd.f32 %v1757, -1.4531521
  %v1760 = vmul.f32 %v1758, %v1753
  %v1761 = vmul.f32 %v1759, %v1755
  %v1762 = vadd.f32 %v1760, 1.4214138
  %v1763 = vadd.f32 %v1761, 1.4214138
  %v1764 = vmul.f32 %v1762, %v1753
  %v1765 = vmul.f32 %v1763, %v1755
  %v1766 = vadd.f32 %v1764, -0.28449672
  %v1767 = vadd.f32 %v1765, -0.28449672
  %v1768 = vmul.f32 %v1766, %v1753
  %v1769 = vmul.f32 %v1767, %v1755
  %v1770 = vadd.f32 %v1768, 0.2548296
  %v1771 = vadd.f32 %v1769, 0.2548296
  %v1772 = vmul.f32 %v1770, %v1753
  %v1773 = vmul.f32 %v1771, %v1755
  %v1774 = vmul.f32 %v1746, %v1746
  %v1775 = vmul.f32 %v1747, %v1747
  %v1776 = vsub.f32 0.0, %v1774
  %v1777 = vsub.f32 0.0, %v1775
  %v1778 = vmul.f32 %v1776, 1.442695
  %v1779 = vpow.pop %v1778
  %v1780 = vmul.f32 %v1777, 1.442695
  %v1781 = vpow.pop %v1780
  %v1782 = vmul.f32 %v1772, %v1779
  %v1783 = vmul.f32 %v1773, %v1781
  %v1784 = vsub.f32 1.0, %v1782
  %v1785 = vsub.f32 1.0, %v1783
  %vm1786 = vcmp.lt.f32.partialorder %v1744, 0.0
  %vm1787 = vcmp.lt.f32.partialorder %v1745, 0.0
  %v1788 = vsub.f32 0.0, %v1784
  %v1789 = vsub.f32 0.0, %v1785
  %v1790 = vsel %vm1786, %v1788, %v1784
  %v1791 = vsel %vm1787, %v1789, %v1785
  %v1792 = vadd.f32 %v1790, 1.0
  %v1793 = vadd.f32 %v1791, 1.0
  %v1794 = vmul.f32 %v1742, %v1792
  %v1795 = vmul.f32 %v1743, %v1793
  %v1796 = vpack.c.bf16 %v1795, %v1794
  %s1797 = scalar_lea.vmem %s12, 32
  %v1798 = vld [vmem:[%s1797] sm:$0xf]
  %v1799 = vld [vmem:[%s1797 + $0x4] sm:$0xf]
  %v1800 = vld [vmem:[%s1797 + $0x8] sm:$0xf]
  %v1801 = vld [vmem:[%s1797 + $0xc] sm:$0xf]
  %v1802 = vld [vmem:[%s1797 + $0x10] sm:$0xf]
  %v1803 = vld [vmem:[%s1797 + $0x14] sm:$0xf]
  %v1804 = vld [vmem:[%s1797 + $0x18] sm:$0xf]
  %v1805 = vld [vmem:[%s1797 + $0x1c] sm:$0xf]
  %s1806 = scalar_lea.vmem %s13, 1
  %v1807 = vld [vmem:[%s1806] sm:$0x1]
  %v1809 = vlaneseq
  %v1810 = vshrl.u32 %v1809, 7
  %v1811 = vsub.s32 0, %v1810
  %v1812 = vrot.slane %v1807, %v1811
  %v1822 = vunpack.c.l.b16 %v1798
  %v1823 = vunpack.c.l.b16 %v1799
  %v1824 = vunpack.c.l.b16 %v1800
  %v1825 = vunpack.c.l.b16 %v1801
  %v1826 = vunpack.c.l.b16 %v1802
  %v1827 = vunpack.c.l.b16 %v1803
  %v1828 = vunpack.c.l.b16 %v1804
  %v1829 = vunpack.c.l.b16 %v1805
  %v1830 = vpack.c.b16 %v1823, %v1822
  %v1831 = vpack.c.b16 %v1825, %v1824
  %v1832 = vpack.c.b16 %v1827, %v1826
  %v1833 = vpack.c.b16 %v1829, %v1828
  %v1839 = vsel %vm932, %v1796, 0
  %1841 = vmatprep.subr.bf16.mxu0 0
  %1842 = vmatpush1.bf16.msra.mxu0 %v1830
  %1843 = vmatprep.subr.bf16.mxu0 0
  %1844 = vmatpush1.bf16.msra.mxu0 %v1831
  %1845 = vmatprep.subr.bf16.mxu0 0
  %1846 = vmatpush1.bf16.msra.mxu0 %v1832
  %1847 = vmatprep.subr.bf16.mxu0 0
  %1848 = vmatpush1.bf16.msra.mxu0 %v1833
  %1849 = vmatprep.subr.bf16.mxu0 0
  %1850 = vmatpush1.bf16.msra.mxu0 0
  %1851 = vmatprep.subr.bf16.mxu0 0
  %1852 = vmatpush1.bf16.msra.mxu0 0
  %1853 = vmatprep.subr.bf16.mxu0 0
  %1854 = vmatpush1.bf16.msra.mxu0 0
  %1855 = vmatprep.subr.bf16.mxu0 0
  %1856 = vmatpush1.bf16.msra.mxu0 0
  %1857 = vmatprep.subr.bf16.mxu0 0
  %1858 = vmatpush1.bf16.msra.mxu0 0
  %1859 = vmatprep.subr.bf16.mxu0 0
  %1860 = vmatpush1.bf16.msra.mxu0 0
  %1861 = vmatprep.subr.bf16.mxu0 0
  %1862 = vmatpush1.bf16.msra.mxu0 0
  %1863 = vmatprep.subr.bf16.mxu0 0
  %1864 = vmatpush1.bf16.msra.mxu0 0
  %1865 = vmatprep.subr.bf16.mxu0 0
  %1866 = vmatpush1.bf16.msra.mxu0 0
  %1867 = vmatprep.subr.bf16.mxu0 0
  %1868 = vmatpush1.bf16.msra.mxu0 0
  %1869 = vmatprep.subr.bf16.mxu0 0
  %1870 = vmatpush1.bf16.msra.mxu0 0
  %1871 = vmatprep.subr.bf16.mxu0 0
  %1872 = vmatpush1.bf16.msra.mxu0 0
  %1873 = vmatprep.mubr.bf16.mxu0 0
  %1874 = vmatmul.mubr.bf16.gmra.mrb[0].mxu0 %v1839
  %v1875 = vpop.f32.mrb[0].mxu0
  %v1876 = vadd.f32 %v1812, %v1875
  %v1877 = vpop.f32.mrb[0].mxu0
  %v1878 = vpop.f32.mrb[0].mxu0
  %v1879 = vadd.f32 %v1812, %v1878
  %v1880 = vpop.f32.mrb[0].mxu0
  %1881 = vdwg.mxu0
  %v1882 = vadd.f32 %v1876, %v1670
  %v1883 = vadd.f32 %v1879, %v1671
  %s1884 = scalar_lea.vmem %s14, 1
  %v1885 = vld [vmem:[%s1884] sm:$0x1]
  %s1886 = scalar_lea.vmem %s15, 1
  %v1887 = vld [vmem:[%s1886] sm:$0x1]
  %v1888 = vsel %vm70, %v1882, 0.0
  %1889 = vadd.xlane.f32.xlu0 %v1888
  %v1890 = vpop.xlane.xlu0 %1889
  %v1891 = vsel %vm70, %v1883, 0.0
  %1892 = vadd.xlane.f32.xlu0 %v1891
  %v1893 = vpop.xlane.xlu0 %1892
  %v1894 = vmul.f32 %v1890, %v77
  %v1895 = vmul.f32 %v1893, %v77
  %v1896 = vsub.f32 %v1882, %v1894
  %v1897 = vsub.f32 %v1883, %v1895
  %v1898 = vmul.f32 %v1896, %v1896
  %v1899 = vmul.f32 %v1897, %v1897
  %v1900 = vsel %vm70, %v1898, 0.0
  %1901 = vadd.xlane.f32.xlu0 %v1900
  %v1902 = vpop.xlane.xlu0 %1901
  %v1903 = vsel %vm70, %v1899, 0.0
  %1904 = vadd.xlane.f32.xlu0 %v1903
  %v1905 = vpop.xlane.xlu0 %1904
  %v1906 = vmul.f32 %v1902, %v77
  %v1907 = vmul.f32 %v1905, %v77
  %v1908 = vadd.f32 %v1906, 1e-12
  %v1909 = vadd.f32 %v1907, 1e-12
  %v1910 = vrsqrt.pop %v1908
  %v1911 = vrsqrt.pop %v1909
  %v1912 = vmul.f32 %v1896, %v1910
  %v1913 = vmul.f32 %v1897, %v1911
  %v1915 = vlaneseq
  %v1916 = vshrl.u32 %v1915, 7
  %v1917 = vsub.s32 0, %v1916
  %v1918 = vrot.slane %v1885, %v1917
  %v1920 = vmul.f32 %v1912, %v1918
  %v1921 = vmul.f32 %v1913, %v1918
  %v1923 = vlaneseq
  %v1924 = vshrl.u32 %v1923, 7
  %v1925 = vsub.s32 0, %v1924
  %v1926 = vrot.slane %v1887, %v1925
  %v1928 = vadd.f32 %v1920, %v1926
  %v1929 = vadd.f32 %v1921, %v1926
  %1930 = vst.msk [vmem:[#allocation3] sm:$0xff] %vm70, %v1928
  %1931 = vst.msk [vmem:[#allocation3 + $0x8] sm:$0xff] %vm70, %v1929
  %v1932 = vld [vmem:[#allocation3] ss:$8 sm:$0x3]
  %v1933 = vpack.c.bf16 %v1932, %v1932
  %v1934 = vld [vmem:[%s16] sm:$0xf]
  %v1935 = vld [vmem:[%s16 + $0x4] sm:$0xf]
  %v1936 = vld [vmem:[%s16 + $0x8] sm:$0xf]
  %v1937 = vld [vmem:[%s16 + $0xc] sm:$0xf]
  %v1938 = vld [vmem:[%s17] sm:$0x1]
  %v1940 = vlaneseq
  %v1941 = vshrl.u32 %v1940, 7
  %v1942 = vsub.s32 0, %v1941
  %v1943 = vrot.slane %v1938, %v1942
  %v1949 = vunpack.c.l.b16 %v1934
  %v1950 = vunpack.c.l.b16 %v1935
  %v1951 = vunpack.c.l.b16 %v1936
  %v1952 = vunpack.c.l.b16 %v1937
  %v1953 = vpack.c.b16 %v1950, %v1949
  %v1954 = vpack.c.b16 %v1952, %v1951
  %v1958 = vsel %vm70, %v1933, 0
  %1960 = vmatprep.subr.bf16.mxu0 0
  %1961 = vmatpush1.bf16.msra.mxu0 %v1953
  %1962 = vmatprep.subr.bf16.mxu0 0
  %1963 = vmatpush1.bf16.msra.mxu0 %v1954
  %1964 = vmatprep.subr.bf16.mxu0 0
  %1965 = vmatpush1.bf16.msra.mxu0 0
  %1966 = vmatprep.subr.bf16.mxu0 0
  %1967 = vmatpush1.bf16.msra.mxu0 0
  %1968 = vmatprep.subr.bf16.mxu0 0
  %1969 = vmatpush1.bf16.msra.mxu0 0
  %1970 = vmatprep.subr.bf16.mxu0 0
  %1971 = vmatpush1.bf16.msra.mxu0 0
  %1972 = vmatprep.subr.bf16.mxu0 0
  %1973 = vmatpush1.bf16.msra.mxu0 0
  %1974 = vmatprep.subr.bf16.mxu0 0
  %1975 = vmatpush1.bf16.msra.mxu0 0
  %1976 = vmatprep.subr.bf16.mxu0 0
  %1977 = vmatpush1.bf16.msra.mxu0 0
  %1978 = vmatprep.subr.bf16.mxu0 0
  %1979 = vmatpush1.bf16.msra.mxu0 0
  %1980 = vmatprep.subr.bf16.mxu0 0
  %1981 = vmatpush1.bf16.msra.mxu0 0
  %1982 = vmatprep.subr.bf16.mxu0 0
  %1983 = vmatpush1.bf16.msra.mxu0 0
  %1984 = vmatprep.subr.bf16.mxu0 0
  %1985 = vmatpush1.bf16.msra.mxu0 0
  %1986 = vmatprep.subr.bf16.mxu0 0
  %1987 = vmatpush1.bf16.msra.mxu0 0
  %1988 = vmatprep.subr.bf16.mxu0 0
  %1989 = vmatpush1.bf16.msra.mxu0 0
  %1990 = vmatprep.subr.bf16.mxu0 0
  %1991 = vmatpush1.bf16.msra.mxu0 0
  %1992 = vmatprep.mubr.bf16.mxu0 0
  %1993 = vmatmul.mubr.bf16.gmra.mrb[0].mxu0 %v1958
  %v1994 = vpop.f32.mrb[0].mxu0
  %v1995 = vadd.f32 %v1943, %v1994
  %v1996 = vpop.f32.mrb[0].mxu0
  %v1997 = vpop.f32.mrb[0].mxu0
  %v1998 = vpop.f32.mrb[0].mxu0
  %1999 = vdwg.mxu0
  %v2000 = vtanh.pop %v1995
  %v2001 = vpack.c.bf16 %v2000, %v2000
  %v2002 = vld [vmem:[%s18] sm:$0xf]
  %v2003 = vld [vmem:[%s18 + $0x4] sm:$0xf]
  %v2004 = vld [vmem:[%s18 + $0x8] sm:$0xf]
  %v2005 = vld [vmem:[%s18 + $0xc] sm:$0xf]
  %v2006 = vld [vmem:[%s19] sm:$0x1]
  %v2008 = vlaneseq
  %v2009 = vshrl.u32 %v2008, 7
  %v2010 = vsub.s32 0, %v2009
  %v2011 = vrot.slane %v2006, %v2010
  %v2017 = vunpack.c.l.b16 %v2002
  %v2018 = vunpack.c.l.b16 %v2003
  %v2019 = vunpack.c.l.b16 %v2004
  %v2020 = vunpack.c.l.b16 %v2005
  %v2021 = vpack.c.b16 %v2018, %v2017
  %v2022 = vpack.c.b16 %v2020, %v2019
  %v2026 = vsel %vm70, %v2001, 0
  %2028 = vmatprep.subr.bf16.mxu0 0
  %2029 = vmatpush1.bf16.msra.mxu0 %v2021
  %2030 = vmatprep.subr.bf16.mxu0 0
  %2031 = vmatpush1.bf16.msra.mxu0 %v2022
  %2032 = vmatprep.subr.bf16.mxu0 0
  %2033 = vmatpush1.bf16.msra.mxu0 0
  %2034 = vmatprep.subr.bf16.mxu0 0
  %2035 = vmatpush1.bf16.msra.mxu0 0
  %2036 = vmatprep.subr.bf16.mxu0 0
  %2037 = vmatpush1.bf16.msra.mxu0 0
  %2038 = vmatprep.subr.bf16.mxu0 0
  %2039 = vmatpush1.bf16.msra.mxu0 0
  %2040 = vmatprep.subr.bf16.mxu0 0
  %2041 = vmatpush1.bf16.msra.mxu0 0
  %2042 = vmatprep.subr.bf16.mxu0 0
  %2043 = vmatpush1.bf16.msra.mxu0 0
  %2044 = vmatprep.subr.bf16.mxu0 0
  %2045 = vmatpush1.bf16.msra.mxu0 0
  %2046 = vmatprep.subr.bf16.mxu0 0
  %2047 = vmatpush1.bf16.msra.mxu0 0
  %2048 = vmatprep.subr.bf16.mxu0 0
  %2049 = vmatpush1.bf16.msra.mxu0 0
  %2050 = vmatprep.subr.bf16.mxu0 0
  %2051 = vmatpush1.bf16.msra.mxu0 0
  %2052 = vmatprep.subr.bf16.mxu0 0
  %2053 = vmatpush1.bf16.msra.mxu0 0
  %2054 = vmatprep.subr.bf16.mxu0 0
  %2055 = vmatpush1.bf16.msra.mxu0 0
  %2056 = vmatprep.subr.bf16.mxu0 0
  %2057 = vmatpush1.bf16.msra.mxu0 0
  %2058 = vmatprep.subr.bf16.mxu0 0
  %2059 = vmatpush1.bf16.msra.mxu0 0
  %2060 = vmatprep.mubr.bf16.mxu0 0
  %2061 = vmatmul.mubr.bf16.gmra.mrb[0].mxu0 %v2026
  %v2062 = vpop.f32.mrb[0].mxu0
  %v2063 = vadd.f32 %v2011, %v2062
  %v2064 = vpop.f32.mrb[0].mxu0
  %v2065 = vpop.f32.mrb[0].mxu0
  %v2066 = vpop.f32.mrb[0].mxu0
  %2067 = vdwg.mxu0
  %vm2068 = vcmask 58368
  %2069 = vst.msk [vmem:[%s20] sm:$0x3] %vm2068, %v2063
  // Predicated region
  $region82: #{_forward.1} parent=0 // pred_check
    _
  $region83: #{_forward.1} parent=0 // pred_check_branch
    %2071 = sbr.rel (0) target = $region85
  $region84: #{_forward.1} parent=0 // pred_region
    _
  $region85: #{_forward.1} parent=0 // pred_fallthru
    _
  // Predicated region
  $region86: #{_forward.1} parent=0 // pred_check
    _
  $region87: #{_forward.1} parent=0 // pred_check_branch
    %2073 = sbr.rel (0) target = $region89
  $region88: #{_forward.1} parent=0 // pred_region
    _
  $region89: #{_forward.1} parent=0 // pred_fallthru
    _

</llo_original>
